<compile_context>
chip_gen: v5e
topology: v5e:2x2
jax: 0.10.0
libtpu: 0.0.40
codegen_flags: <defaults>
</compile_context>

<pallas_src>
import jax
import jax.numpy as jnp
from jax.experimental import pallas as pl
from jax.experimental.pallas import tpu as pltpu

# ----------------------------------------------------------------------------
# Config (mirrors SegRNN.__init__: seq_len == 96 -> seg_len == 16)
# ----------------------------------------------------------------------------
SEQ_LEN, PRED_LEN = 96, 32
ENC_IN, D_MODEL = 4, 32
BATCH, NUM_MODELS = 2, 4

SEG_LEN = 16
SEG_NUM_X = SEQ_LEN // SEG_LEN          # 6
SEG_NUM_Y = PRED_LEN // SEG_LEN         # 2
N_SERIES = BATCH * ENC_IN               # 8
NM = N_SERIES * SEG_NUM_Y               # 16 decode rows
DP = NUM_MODELS * D_MODEL               # 128 packed hidden lanes
NX = SEG_NUM_X * N_SERIES               # 48 encoder input rows
G3 = 3 * DP                             # 384 packed gate lanes
W_ROWS = 2 * DP + SEG_LEN + DP          # 400 rows of the bf16 weight slab
MISC_ROWS = 8 + NM                      # 24 rows of the f32 misc slab
EPS = 1e-5


# ----------------------------------------------------------------------------
# Fused kernel: RevIN norm + value embedding + GRU encoder + pmf decode +
# prediction head + ensemble aggregation + RevIN denorm.
# ----------------------------------------------------------------------------
def segrnn_fused_kernel(x_ref, w_ref, misc_ref, o_ref):
    f32, bf16 = jnp.float32, jnp.bfloat16

    # ---- static slices out of the two packed parameter slabs ----
    wih = w_ref[0:DP, :]                                     # [128,384] bf16
    whh = w_ref[DP:2 * DP, :]                                # [128,384] bf16
    wemb = w_ref[2 * DP:2 * DP + SEG_LEN, 0:DP]              # [16,128]  bf16
    wpa = w_ref[2 * DP + SEG_LEN:W_ROWS, 0:SEG_LEN]          # [128,16]  bf16

    bih_f = misc_ref[0:1, :]                                 # [1,384] b_ih + b_hh[r,z]
    bemb = misc_ref[1:2, 0:DP]                               # [1,128]
    bhh_n = misc_ref[2:3, 0:DP]                              # [1,128]
    bpa = misc_ref[3:4, 0:SEG_LEN]                           # [1,16]
    wsum = misc_ref[4:5, 0:1]                                # [1,1]
    b_agg = misc_ref[4:5, 1:2]                               # [1,1]
    gin_dec = misc_ref[8:8 + NM, :]                          # [16,384] precomputed

    # ---- RevIN 'norm' statistics fused in-kernel (row = t*8 + b*C + c) ----
    x48 = x_ref[...]                                         # [48,16] raw f32
    s = x48[0:N_SERIES, :]
    for t in range(1, SEG_NUM_X):
        s = s + x48[t * N_SERIES:(t + 1) * N_SERIES, :]
    mean8 = jnp.sum(s, axis=1, keepdims=True) * (1.0 / SEQ_LEN)          # [8,1]
    mean48 = jnp.concatenate([mean8] * SEG_NUM_X, axis=0)                # [48,1]
    xc = x48 - mean48
    sq = xc[0:N_SERIES, :] * xc[0:N_SERIES, :]
    for t in range(1, SEG_NUM_X):
        blk = xc[t * N_SERIES:(t + 1) * N_SERIES, :]
        sq = sq + blk * blk
    var8 = jnp.sum(sq, axis=1, keepdims=True) * (1.0 / SEQ_LEN)
    std8 = jnp.sqrt(var8 + EPS)                                          # [8,1]
    inv8 = 1.0 / std8
    xn = xc * jnp.concatenate([inv8] * SEG_NUM_X, axis=0)                # [48,16]

    # ---- value embedding (+ReLU) and hoisted input-side GRU projection ----
    emb = jnp.maximum(
        jnp.dot(xn.astype(bf16), wemb, preferred_element_type=f32) + bemb, 0.0)   # [48,128]
    gin = jnp.dot(emb.astype(bf16), wih, preferred_element_type=f32) + bih_f      # [48,384]

    # hoisted bias broadcasts (JAX does not CSE broadcast_in_dim)
    bhh_n8 = jnp.broadcast_to(bhh_n, (N_SERIES, DP))
    bhh_n16 = jnp.broadcast_to(bhh_n, (NM, DP))

    def gru_gates(gi, gh, h, bhhn):
        # gi already contains b_ih (all gates) + b_hh (r,z); only b_hh[n] here.
        r = jax.nn.sigmoid(gi[:, 0:DP] + gh[:, 0:DP])
        z = jax.nn.sigmoid(gi[:, DP:2 * DP] + gh[:, DP:2 * DP])
        n = jnp.tanh(gi[:, 2 * DP:G3] + r * (gh[:, 2 * DP:G3] + bhhn))
        return (1.0 - z) * n + z * h

    # encoder step 0 (h == 0): the recurrent matmul is identically zero -> skip.
    gi0 = gin[0:N_SERIES, :]
    r0 = jax.nn.sigmoid(gi0[:, 0:DP])
    z0 = jax.nn.sigmoid(gi0[:, DP:2 * DP])
    n0 = jnp.tanh(gi0[:, 2 * DP:G3] + r0 * bhh_n8)
    h = (1.0 - z0) * n0                                                  # [8,128]

    # encoder steps 1..5: only h @ W_hh on the serial critical path.
    for t in range(1, SEG_NUM_X):
        gh = jnp.dot(h.astype(bf16), whh, preferred_element_type=f32)    # [8,384]
        h = gru_gates(gin[t * N_SERIES:(t + 1) * N_SERIES, :], gh, h, bhh_n8)

    # pmf decode: one 8-row recurrent matmul, sublane-duplicated to 16 rows.
    gh8 = jnp.dot(h.astype(bf16), whh, preferred_element_type=f32)       # [8,384]
    gh16 = jnp.concatenate([gh8, gh8], axis=0)                           # [16,384]
    h16 = jnp.concatenate([h, h], axis=0)                                # [16,128]
    hy = gru_gates(gin_dec, gh16, h16, bhh_n16)                          # [16,128]

    # prediction head (ensemble Linear(4->1) folded) + fused RevIN denorm.
    y = jnp.dot(hy.astype(bf16), wpa, preferred_element_type=f32) + bpa  # [16,16]
    std16 = jnp.concatenate([std8, std8], axis=0)                        # [16,1]
    shift16 = jnp.concatenate([mean8, mean8], axis=0) * wsum + b_agg     # [16,1]
    o_ref[...] = y * std16 + shift16


def run_segrnn_fused(x48, w_slab, misc):
    full = lambda shape: pl.BlockSpec(shape, lambda i: (0, 0))
    return pl.pallas_call(
        segrnn_fused_kernel,
        out_shape=jax.ShapeDtypeStruct((NM, SEG_LEN), jnp.float32),
        grid=(1,),
        in_specs=[
            full((NX, SEG_LEN)),       # raw segmented input (per-call data)
            full((W_ROWS, G3)),        # bf16 weight slab: W_ih | W_hh | W_emb | W_head
            full((MISC_ROWS, G3)),     # f32 misc slab: biases, decode gin, scalars
        ],
        out_specs=full((NM, SEG_LEN)),
        compiler_params=pltpu.CompilerParams(dimension_semantics=("arbitrary",)),
    )(x48, w_slab, misc)


# ----------------------------------------------------------------------------
# Full ensemble forward (only layout plumbing remains as wrapper glue).
# ----------------------------------------------------------------------------
def ensemble_forward(x, packed):
    # [B,T,C] -> raw time-major segment rows [48,16]  (row = t*8 + b*C + c)
    x48 = (x.reshape(BATCH, SEG_NUM_X, SEG_LEN, ENC_IN)
             .transpose(1, 0, 3, 2)
             .reshape(NX, SEG_LEN))
    out16 = run_segrnn_fused(x48, packed['w_slab'], packed['misc'])      # [16,16]
    # rows (m_y, b, c) -> [B, pred_len, C]
    y = (out16.reshape(SEG_NUM_Y, BATCH, ENC_IN, SEG_LEN)
              .transpose(1, 0, 3, 2)
              .reshape(BATCH, PRED_LEN, ENC_IN))
    return y


# ----------------------------------------------------------------------------
# Parameter init (PyTorch-like per-model layout) + one-time slab packing.
# ----------------------------------------------------------------------------
def init_params(key):
    ks = jax.random.split(key, 12)
    k_emb = 1.0 / jnp.sqrt(SEG_LEN)
    k_d = 1.0 / jnp.sqrt(D_MODEL)
    k_agg = 1.0 / jnp.sqrt(NUM_MODELS)
    u = lambda k, shp, s: jax.random.uniform(k, shp, jnp.float32, -s, s)
    return {
        'wemb':  u(ks[0], (NUM_MODELS, SEG_LEN, D_MODEL), k_emb),
        'bemb':  u(ks[1], (NUM_MODELS, 1, D_MODEL), k_emb),
        'wih':   u(ks[2], (NUM_MODELS, 3, D_MODEL, D_MODEL), k_d),   # (r,z,n)
        'bih':   u(ks[3], (NUM_MODELS, 3, 1, D_MODEL), k_d),
        'whh':   u(ks[4], (NUM_MODELS, 3, D_MODEL, D_MODEL), k_d),
        'bhh':   u(ks[5], (NUM_MODELS, 3, 1, D_MODEL), k_d),
        'wpred': u(ks[6], (NUM_MODELS, D_MODEL, SEG_LEN), k_d),
        'bpred': u(ks[7], (NUM_MODELS, 1, SEG_LEN), k_d),
        'w_agg': u(ks[8], (NUM_MODELS,), k_agg),
        'b_agg': u(ks[9], (1,), k_agg),
        'pos_emb':  jax.random.normal(ks[10], (NUM_MODELS, SEG_NUM_Y, D_MODEL // 2), jnp.float32),
        'chan_emb': jax.random.normal(ks[11], (NUM_MODELS, ENC_IN, D_MODEL // 2), jnp.float32),
    }


def pack_params(p):
    M, D, SL, D2 = NUM_MODELS, D_MODEL, SEG_LEN, D_MODEL // 2
    P = jax.lax.Precision.HIGHEST

    def lane_cat(a):            # [M, R, K] -> [R, M*K], model m at cols m*K
        return jnp.transpose(a, (1, 0, 2)).reshape(a.shape[1], M * a.shape[2])

    def block_diag_gates(w):    # [M, 3, D, D] -> [M*D, 3*M*D]
        out = jnp.zeros((M * D, 3 * M * D), jnp.float32)
        for g in range(3):
            for m in range(M):
                out = out.at[m * D:(m + 1) * D,
                             g * DP + m * D:g * DP + (m + 1) * D].set(w[m, g])
        return out

    def pack_gate_bias(b):      # [M, 3, 1, D] -> [1, 3*M*D], order (gate, model, d)
        return jnp.transpose(b[:, :, 0, :], (1, 0, 2)).reshape(1, 3 * M * D)

    wemb_p = lane_cat(p['wemb'])                                   # [16,128]
    bemb_p = lane_cat(p['bemb'])                                   # [1,128]
    wih_p = block_diag_gates(p['wih'])                             # [128,384]
    whh_p = block_diag_gates(p['whh'])                             # [128,384]
    bih_p = pack_gate_bias(p['bih'])                               # [1,384]
    bhh_p = pack_gate_bias(p['bhh'])                               # [1,384]

    # fold b_hh (r,z gates) into b_ih; keep the n-gate slice separate
    bih_fold = bih_p.at[:, :2 * DP].add(bhh_p[:, :2 * DP])
    bhh_n = bhh_p[:, 2 * DP:]

    # decode-step positional/channel GRU input, rows ordered (m_y, b, c);
    # the input-side projection is data-independent -> precompute it here.
    pos_part = jnp.broadcast_to(p['pos_emb'][:, :, None, None, :],
                                (M, SEG_NUM_Y, BATCH, ENC_IN, D2))
    chan_part = jnp.broadcast_to(p['chan_emb'][:, None, None, :, :],
                                 (M, SEG_NUM_Y, BATCH, ENC_IN, D2))
    pos_m = jnp.concatenate([pos_part, chan_part], axis=-1).reshape(M, NM, D)
    pos_p = lane_cat(pos_m)                                        # [16,128]
    gin_dec = jnp.dot(pos_p, wih_p, precision=P) + bih_fold        # [16,384]

    # prediction head with the ensemble Linear(4->1) folded in
    wpa = jnp.concatenate([p['w_agg'][m] * p['wpred'][m] for m in range(M)], axis=0)
    bpa = sum(p['w_agg'][m] * p['bpred'][m] for m in range(M))

    # --- bf16 weight slab (all MXU RHS operands) ---
    w_slab = jnp.zeros((W_ROWS, G3), jnp.float32)
    w_slab = w_slab.at[0:DP, :].set(wih_p)
    w_slab = w_slab.at[DP:2 * DP, :].set(whh_p)
    w_slab = w_slab.at[2 * DP:2 * DP + SL, 0:DP].set(wemb_p)
    w_slab = w_slab.at[2 * DP + SL:W_ROWS, 0:SL].set(wpa)
    w_slab = w_slab.astype(jnp.bfloat16)

    # --- f32 misc slab (biases, scalars, precomputed decode projections) ---
    misc = jnp.zeros((MISC_ROWS, G3), jnp.float32)
    misc = misc.at[0, :].set(bih_fold[0])
    misc = misc.at[1, 0:DP].set(bemb_p[0])
    misc = misc.at[2, 0:DP].set(bhh_n[0])
    misc = misc.at[3, 0:SL].set(bpa[0])
    misc = misc.at[4, 0].set(jnp.sum(p['w_agg']))
    misc = misc.at[4, 1].set(p['b_agg'][0])
    misc = misc.at[8:8 + NM, :].set(gin_dec)
    return {'w_slab': w_slab, 'misc': misc}


# ----------------------------------------------------------------------------
# Pure-JAX reference (mirrors the PyTorch forward) for a correctness check.
# ----------------------------------------------------------------------------
def reference_forward(x, p):
    P = jax.lax.Precision.HIGHEST
    mean = jnp.mean(x, axis=1, keepdims=True)
    xc = x - mean
    std = jnp.sqrt(jnp.mean(xc * xc, axis=1, keepdims=True) + EPS)
    xn = xc / std
    x_seg = jnp.transpose(xn, (0, 2, 1)).reshape(N_SERIES, SEG_NUM_X, SEG_LEN)

    D2 = D_MODEL // 2
    ys = []
    for m in range(NUM_MODELS):
        wemb, bemb = p['wemb'][m], p['bemb'][m]
        wih, bih = p['wih'][m], p['bih'][m]
        whh, bhh = p['whh'][m], p['bhh'][m]

        def gru(xt, h):
            r = jax.nn.sigmoid(jnp.dot(xt, wih[0], precision=P) + bih[0]
                               + jnp.dot(h, whh[0], precision=P) + bhh[0])
            z = jax.nn.sigmoid(jnp.dot(xt, wih[1], precision=P) + bih[1]
                               + jnp.dot(h, whh[1], precision=P) + bhh[1])
            n = jnp.tanh(jnp.dot(xt, wih[2], precision=P) + bih[2]
                         + r * (jnp.dot(h, whh[2], precision=P) + bhh[2]))
            return (1.0 - z) * n + z * h

        h = jnp.zeros((N_SERIES, D_MODEL), jnp.float32)
        for t in range(SEG_NUM_X):
            xt = jnp.maximum(jnp.dot(x_seg[:, t, :], wemb, precision=P) + bemb, 0.0)
            h = gru(xt, h)

        # pos_emb rows ordered (b, c, m_y) as in the PyTorch code
        pos_part = jnp.broadcast_to(p['pos_emb'][m][None, :, :], (ENC_IN, SEG_NUM_Y, D2))
        chan_part = jnp.broadcast_to(p['chan_emb'][m][:, None, :], (ENC_IN, SEG_NUM_Y, D2))
        pos_in = jnp.concatenate([pos_part, chan_part], -1).reshape(ENC_IN * SEG_NUM_Y, D_MODEL)
        pos_in = jnp.tile(pos_in, (BATCH, 1))

        h_exp = jnp.repeat(h, SEG_NUM_Y, axis=0)
        hy = gru(pos_in, h_exp)
        y_seg = jnp.dot(hy, p['wpred'][m], precision=P) + p['bpred'][m]
        y = y_seg.reshape(BATCH, ENC_IN, PRED_LEN).transpose(0, 2, 1)
        ys.append(y * std + mean)

    stacked = jnp.stack(ys, axis=-1)                                   # [B,P,C,M]
    return jnp.einsum('bpcm,m->bpc', stacked, p['w_agg']) + p['b_agg'][0]


if __name__ == "__main__":
    key = jax.random.PRNGKey(0)
    k_x, k_p = jax.random.split(key)
    x = jax.random.normal(k_x, (BATCH, SEQ_LEN, ENC_IN), jnp.float32)

    params = init_params(k_p)
    packed = pack_params(params)

    fwd = jax.jit(ensemble_forward)
    out = jax.block_until_ready(fwd(x, packed))
    ref = jax.block_until_ready(jax.jit(reference_forward)(x, params))

    assert out.shape == (BATCH, PRED_LEN, ENC_IN), out.shape
    max_err = float(jnp.max(jnp.abs(out - ref)))
    # Tolerance accounts for bf16 MXU operands (f32 accumulation, f32 gate math)
    # vs the Precision.HIGHEST f32 reference, per the perf review.
    assert jnp.allclose(out, ref, atol=3e-2, rtol=3e-2), max_err
    print("KERNEL_OK")
</pallas_src>

<mosaic_0001>
module attributes {stable_mosaic.version = 11 : i64} {
  func.func @segrnn_fused_kernel(%arg0: i32, %arg1: memref<48x16xf32, #tpu.memory_space<vmem>>, %arg2: memref<400x384xbf16, #tpu.memory_space<vmem>>, %arg3: memref<24x384xf32, #tpu.memory_space<vmem>>, %arg4: memref<16x16xf32, #tpu.memory_space<vmem>>) attributes {dimension_semantics = [#tpu.dimension_semantics<arbitrary>], iteration_bounds = array<i64: 1>, scalar_prefetch = 0 : i64, scratch_operands = 0 : i64, tpu.core_type = #tpu.core_type<tc>, window_params = [{pipeline_mode = #tpu.pipeline_mode<synchronous>, transform_indices = @transform_0, window_bounds = array<i64: 48, 16>}, {pipeline_mode = #tpu.pipeline_mode<synchronous>, transform_indices = @transform_1, window_bounds = array<i64: 400, 384>}, {pipeline_mode = #tpu.pipeline_mode<synchronous>, transform_indices = @transform_2, window_bounds = array<i64: 24, 384>}, {pipeline_mode = #tpu.pipeline_mode<synchronous>, transform_indices = @transform_3, window_bounds = array<i64: 16, 16>}]} {
    %c0 = arith.constant 0 : index
    %c0_0 = arith.constant 0 : index
    %0 = vector.load %arg2[%c0, %c0_0] : memref<400x384xbf16, #tpu.memory_space<vmem>>, vector<128x384xbf16>
    %c128 = arith.constant 128 : index
    %c0_1 = arith.constant 0 : index
    %1 = vector.load %arg2[%c128, %c0_1] : memref<400x384xbf16, #tpu.memory_space<vmem>>, vector<128x384xbf16>
    %c256 = arith.constant 256 : index
    %c0_2 = arith.constant 0 : index
    %2 = vector.load %arg2[%c256, %c0_2] : memref<400x384xbf16, #tpu.memory_space<vmem>>, vector<16x128xbf16>
    %c272 = arith.constant 272 : index
    %c0_3 = arith.constant 0 : index
    %3 = vector.load %arg2[%c272, %c0_3] : memref<400x384xbf16, #tpu.memory_space<vmem>>, vector<128x16xbf16>
    %c0_4 = arith.constant 0 : index
    %c0_5 = arith.constant 0 : index
    %4 = vector.load %arg3[%c0_4, %c0_5] : memref<24x384xf32, #tpu.memory_space<vmem>>, vector<1x384xf32>
    %c1 = arith.constant 1 : index
    %c0_6 = arith.constant 0 : index
    %5 = vector.load %arg3[%c1, %c0_6] : memref<24x384xf32, #tpu.memory_space<vmem>>, vector<1x128xf32>
    %c2 = arith.constant 2 : index
    %c0_7 = arith.constant 0 : index
    %6 = vector.load %arg3[%c2, %c0_7] : memref<24x384xf32, #tpu.memory_space<vmem>>, vector<1x128xf32>
    %c3 = arith.constant 3 : index
    %c0_8 = arith.constant 0 : index
    %7 = vector.load %arg3[%c3, %c0_8] : memref<24x384xf32, #tpu.memory_space<vmem>>, vector<1x16xf32>
    %c4 = arith.constant 4 : index
    %c0_9 = arith.constant 0 : index
    %8 = vector.load %arg3[%c4, %c0_9] : memref<24x384xf32, #tpu.memory_space<vmem>>, vector<1x1xf32>
    %c4_10 = arith.constant 4 : index
    %c1_11 = arith.constant 1 : index
    %9 = vector.load %arg3[%c4_10, %c1_11] : memref<24x384xf32, #tpu.memory_space<vmem>>, vector<1x1xf32>
    %c8 = arith.constant 8 : index
    %c0_12 = arith.constant 0 : index
    %10 = vector.load %arg3[%c8, %c0_12] : memref<24x384xf32, #tpu.memory_space<vmem>>, vector<16x384xf32>
    %c0_13 = arith.constant 0 : index
    %c0_14 = arith.constant 0 : index
    %11 = vector.load %arg1[%c0_13, %c0_14] : memref<48x16xf32, #tpu.memory_space<vmem>>, vector<48x16xf32>
    %12 = vector.extract_strided_slice %11 {offsets = [0, 0], sizes = [8, 16], strides = [1, 1]} : vector<48x16xf32> to vector<8x16xf32>
    %13 = vector.extract_strided_slice %11 {offsets = [8, 0], sizes = [8, 16], strides = [1, 1]} : vector<48x16xf32> to vector<8x16xf32>
    %14 = arith.addf %12, %13 : vector<8x16xf32>
    %15 = vector.extract_strided_slice %11 {offsets = [16, 0], sizes = [8, 16], strides = [1, 1]} : vector<48x16xf32> to vector<8x16xf32>
    %16 = arith.addf %14, %15 : vector<8x16xf32>
    %17 = vector.extract_strided_slice %11 {offsets = [24, 0], sizes = [8, 16], strides = [1, 1]} : vector<48x16xf32> to vector<8x16xf32>
    %18 = arith.addf %16, %17 : vector<8x16xf32>
    %19 = vector.extract_strided_slice %11 {offsets = [32, 0], sizes = [8, 16], strides = [1, 1]} : vector<48x16xf32> to vector<8x16xf32>
    %20 = arith.addf %18, %19 : vector<8x16xf32>
    %21 = vector.extract_strided_slice %11 {offsets = [40, 0], sizes = [8, 16], strides = [1, 1]} : vector<48x16xf32> to vector<8x16xf32>
    %22 = arith.addf %20, %21 : vector<8x16xf32>
    %cst = arith.constant dense<0.000000e+00> : vector<8xf32>
    %23 = vector.multi_reduction <add>, %22, %cst [1] : vector<8x16xf32> to vector<8xf32>
    %24 = vector.shape_cast %23 : vector<8xf32> to vector<8x1xf32>
    %cst_15 = arith.constant 0.010416667 : f32
    %25 = vector.broadcast %cst_15 : f32 to vector<8x1xf32>
    %26 = arith.mulf %24, %25 : vector<8x1xf32>
    %27 = tpu.concatenate %26, %26, %26, %26, %26, %26 in 0 : vector<8x1xf32>, vector<8x1xf32>, vector<8x1xf32>, vector<8x1xf32>, vector<8x1xf32>, vector<8x1xf32> -> vector<48x1xf32>
    %28 = vector.broadcast %27 : vector<48x1xf32> to vector<48x16xf32>
    %29 = arith.subf %11, %28 : vector<48x16xf32>
    %30 = vector.extract_strided_slice %29 {offsets = [0, 0], sizes = [8, 16], strides = [1, 1]} : vector<48x16xf32> to vector<8x16xf32>
    %31 = vector.extract_strided_slice %29 {offsets = [0, 0], sizes = [8, 16], strides = [1, 1]} : vector<48x16xf32> to vector<8x16xf32>
    %32 = arith.mulf %30, %31 : vector<8x16xf32>
    %33 = vector.extract_strided_slice %29 {offsets = [8, 0], sizes = [8, 16], strides = [1, 1]} : vector<48x16xf32> to vector<8x16xf32>
    %34 = arith.mulf %33, %33 : vector<8x16xf32>
    %35 = arith.addf %32, %34 : vector<8x16xf32>
    %36 = vector.extract_strided_slice %29 {offsets = [16, 0], sizes = [8, 16], strides = [1, 1]} : vector<48x16xf32> to vector<8x16xf32>
    %37 = arith.mulf %36, %36 : vector<8x16xf32>
    %38 = arith.addf %35, %37 : vector<8x16xf32>
    %39 = vector.extract_strided_slice %29 {offsets = [24, 0], sizes = [8, 16], strides = [1, 1]} : vector<48x16xf32> to vector<8x16xf32>
    %40 = arith.mulf %39, %39 : vector<8x16xf32>
    %41 = arith.addf %38, %40 : vector<8x16xf32>
    %42 = vector.extract_strided_slice %29 {offsets = [32, 0], sizes = [8, 16], strides = [1, 1]} : vector<48x16xf32> to vector<8x16xf32>
    %43 = arith.mulf %42, %42 : vector<8x16xf32>
    %44 = arith.addf %41, %43 : vector<8x16xf32>
    %45 = vector.extract_strided_slice %29 {offsets = [40, 0], sizes = [8, 16], strides = [1, 1]} : vector<48x16xf32> to vector<8x16xf32>
    %46 = arith.mulf %45, %45 : vector<8x16xf32>
    %47 = arith.addf %44, %46 : vector<8x16xf32>
    %cst_16 = arith.constant dense<0.000000e+00> : vector<8xf32>
    %48 = vector.multi_reduction <add>, %47, %cst_16 [1] : vector<8x16xf32> to vector<8xf32>
    %49 = vector.shape_cast %48 : vector<8xf32> to vector<8x1xf32>
    %cst_17 = arith.constant 0.010416667 : f32
    %50 = vector.broadcast %cst_17 : f32 to vector<8x1xf32>
    %51 = arith.mulf %49, %50 : vector<8x1xf32>
    %cst_18 = arith.constant 9.99999974E-6 : f32
    %52 = vector.broadcast %cst_18 : f32 to vector<8x1xf32>
    %53 = arith.addf %51, %52 : vector<8x1xf32>
    %54 = math.sqrt %53 : vector<8x1xf32>
    %cst_19 = arith.constant 1.000000e+00 : f32
    %55 = vector.broadcast %cst_19 : f32 to vector<8x1xf32>
    %56 = arith.divf %55, %54 : vector<8x1xf32>
    %57 = tpu.concatenate %56, %56, %56, %56, %56, %56 in 0 : vector<8x1xf32>, vector<8x1xf32>, vector<8x1xf32>, vector<8x1xf32>, vector<8x1xf32>, vector<8x1xf32> -> vector<48x1xf32>
    %58 = vector.broadcast %57 : vector<48x1xf32> to vector<48x16xf32>
    %59 = arith.mulf %29, %58 : vector<48x16xf32>
    %60 = arith.truncf %59 : vector<48x16xf32> to vector<48x16xbf16>
    %cst_20 = arith.constant dense<0.000000e+00> : vector<48x128xf32>
    %61 = tpu.matmul %60, %2, %cst_20 {dimension_numbers = #tpu.dot_dimension_numbers<[1], [0], [0], [1], [0, 0, 1, 1], [], []>} : vector<48x16xbf16>, vector<16x128xbf16>, vector<48x128xf32> -> vector<48x128xf32>
    %62 = vector.broadcast %5 : vector<1x128xf32> to vector<48x128xf32>
    %63 = arith.addf %61, %62 : vector<48x128xf32>
    %cst_21 = arith.constant 0.000000e+00 : f32
    %64 = vector.broadcast %cst_21 : f32 to vector<48x128xf32>
    %65 = arith.maximumf %63, %64 : vector<48x128xf32>
    %66 = arith.truncf %65 : vector<48x128xf32> to vector<48x128xbf16>
    %cst_22 = arith.constant dense<0.000000e+00> : vector<48x384xf32>
    %67 = tpu.matmul %66, %0, %cst_22 {dimension_numbers = #tpu.dot_dimension_numbers<[1], [0], [0], [1], [0, 0, 1, 1], [], []>} : vector<48x128xbf16>, vector<128x384xbf16>, vector<48x384xf32> -> vector<48x384xf32>
    %68 = vector.broadcast %4 : vector<1x384xf32> to vector<48x384xf32>
    %69 = arith.addf %67, %68 : vector<48x384xf32>
    %70 = vector.shape_cast %6 : vector<1x128xf32> to vector<1x128xf32>
    %71 = vector.broadcast %70 : vector<1x128xf32> to vector<8x128xf32>
    %72 = vector.shape_cast %6 : vector<1x128xf32> to vector<1x128xf32>
    %73 = vector.broadcast %72 : vector<1x128xf32> to vector<16x128xf32>
    %74 = vector.extract_strided_slice %69 {offsets = [0, 0], sizes = [8, 384], strides = [1, 1]} : vector<48x384xf32> to vector<8x384xf32>
    %75 = vector.extract_strided_slice %74 {offsets = [0, 0], sizes = [8, 128], strides = [1, 1]} : vector<8x384xf32> to vector<8x128xf32>
    %76 = arith.negf %75 : vector<8x128xf32>
    %77 = math.exp %76 : vector<8x128xf32>
    %cst_23 = arith.constant 1.000000e+00 : f32
    %78 = vector.broadcast %cst_23 : f32 to vector<8x128xf32>
    %79 = arith.addf %78, %77 : vector<8x128xf32>
    %80 = arith.divf %78, %79 : vector<8x128xf32>
    %81 = vector.extract_strided_slice %74 {offsets = [0, 128], sizes = [8, 128], strides = [1, 1]} : vector<8x384xf32> to vector<8x128xf32>
    %82 = arith.negf %81 : vector<8x128xf32>
    %83 = math.exp %82 : vector<8x128xf32>
    %cst_24 = arith.constant 1.000000e+00 : f32
    %84 = vector.broadcast %cst_24 : f32 to vector<8x128xf32>
    %85 = arith.addf %84, %83 : vector<8x128xf32>
    %86 = arith.divf %84, %85 : vector<8x128xf32>
    %87 = vector.extract_strided_slice %74 {offsets = [0, 256], sizes = [8, 128], strides = [1, 1]} : vector<8x384xf32> to vector<8x128xf32>
    %88 = arith.mulf %80, %71 : vector<8x128xf32>
    %89 = arith.addf %87, %88 : vector<8x128xf32>
    %90 = math.tanh %89 : vector<8x128xf32>
    %cst_25 = arith.constant 1.000000e+00 : f32
    %91 = vector.broadcast %cst_25 : f32 to vector<8x128xf32>
    %92 = arith.subf %91, %86 : vector<8x128xf32>
    %93 = arith.mulf %92, %90 : vector<8x128xf32>
    %94 = arith.truncf %93 : vector<8x128xf32> to vector<8x128xbf16>
    %cst_26 = arith.constant dense<0.000000e+00> : vector<8x384xf32>
    %95 = tpu.matmul %94, %1, %cst_26 {dimension_numbers = #tpu.dot_dimension_numbers<[1], [0], [0], [1], [0, 0, 1, 1], [], []>} : vector<8x128xbf16>, vector<128x384xbf16>, vector<8x384xf32> -> vector<8x384xf32>
    %96 = vector.extract_strided_slice %69 {offsets = [8, 0], sizes = [8, 384], strides = [1, 1]} : vector<48x384xf32> to vector<8x384xf32>
    %97 = vector.extract_strided_slice %96 {offsets = [0, 0], sizes = [8, 128], strides = [1, 1]} : vector<8x384xf32> to vector<8x128xf32>
    %98 = vector.extract_strided_slice %95 {offsets = [0, 0], sizes = [8, 128], strides = [1, 1]} : vector<8x384xf32> to vector<8x128xf32>
    %99 = arith.addf %97, %98 : vector<8x128xf32>
    %100 = arith.negf %99 : vector<8x128xf32>
    %101 = math.exp %100 : vector<8x128xf32>
    %cst_27 = arith.constant 1.000000e+00 : f32
    %102 = vector.broadcast %cst_27 : f32 to vector<8x128xf32>
    %103 = arith.addf %102, %101 : vector<8x128xf32>
    %104 = arith.divf %102, %103 : vector<8x128xf32>
    %105 = vector.extract_strided_slice %96 {offsets = [0, 128], sizes = [8, 128], strides = [1, 1]} : vector<8x384xf32> to vector<8x128xf32>
    %106 = vector.extract_strided_slice %95 {offsets = [0, 128], sizes = [8, 128], strides = [1, 1]} : vector<8x384xf32> to vector<8x128xf32>
    %107 = arith.addf %105, %106 : vector<8x128xf32>
    %108 = arith.negf %107 : vector<8x128xf32>
    %109 = math.exp %108 : vector<8x128xf32>
    %cst_28 = arith.constant 1.000000e+00 : f32
    %110 = vector.broadcast %cst_28 : f32 to vector<8x128xf32>
    %111 = arith.addf %110, %109 : vector<8x128xf32>
    %112 = arith.divf %110, %111 : vector<8x128xf32>
    %113 = vector.extract_strided_slice %96 {offsets = [0, 256], sizes = [8, 128], strides = [1, 1]} : vector<8x384xf32> to vector<8x128xf32>
    %114 = vector.extract_strided_slice %95 {offsets = [0, 256], sizes = [8, 128], strides = [1, 1]} : vector<8x384xf32> to vector<8x128xf32>
    %115 = arith.addf %114, %71 : vector<8x128xf32>
    %116 = arith.mulf %104, %115 : vector<8x128xf32>
    %117 = arith.addf %113, %116 : vector<8x128xf32>
    %118 = math.tanh %117 : vector<8x128xf32>
    %cst_29 = arith.constant 1.000000e+00 : f32
    %119 = vector.broadcast %cst_29 : f32 to vector<8x128xf32>
    %120 = arith.subf %119, %112 : vector<8x128xf32>
    %121 = arith.mulf %120, %118 : vector<8x128xf32>
    %122 = arith.mulf %112, %93 : vector<8x128xf32>
    %123 = arith.addf %121, %122 : vector<8x128xf32>
    %124 = arith.truncf %123 : vector<8x128xf32> to vector<8x128xbf16>
    %cst_30 = arith.constant dense<0.000000e+00> : vector<8x384xf32>
    %125 = tpu.matmul %124, %1, %cst_30 {dimension_numbers = #tpu.dot_dimension_numbers<[1], [0], [0], [1], [0, 0, 1, 1], [], []>} : vector<8x128xbf16>, vector<128x384xbf16>, vector<8x384xf32> -> vector<8x384xf32>
    %126 = vector.extract_strided_slice %69 {offsets = [16, 0], sizes = [8, 384], strides = [1, 1]} : vector<48x384xf32> to vector<8x384xf32>
    %127 = vector.extract_strided_slice %126 {offsets = [0, 0], sizes = [8, 128], strides = [1, 1]} : vector<8x384xf32> to vector<8x128xf32>
    %128 = vector.extract_strided_slice %125 {offsets = [0, 0], sizes = [8, 128], strides = [1, 1]} : vector<8x384xf32> to vector<8x128xf32>
    %129 = arith.addf %127, %128 : vector<8x128xf32>
    %130 = arith.negf %129 : vector<8x128xf32>
    %131 = math.exp %130 : vector<8x128xf32>
    %cst_31 = arith.constant 1.000000e+00 : f32
    %132 = vector.broadcast %cst_31 : f32 to vector<8x128xf32>
    %133 = arith.addf %132, %131 : vector<8x128xf32>
    %134 = arith.divf %132, %133 : vector<8x128xf32>
    %135 = vector.extract_strided_slice %126 {offsets = [0, 128], sizes = [8, 128], strides = [1, 1]} : vector<8x384xf32> to vector<8x128xf32>
    %136 = vector.extract_strided_slice %125 {offsets = [0, 128], sizes = [8, 128], strides = [1, 1]} : vector<8x384xf32> to vector<8x128xf32>
    %137 = arith.addf %135, %136 : vector<8x128xf32>
    %138 = arith.negf %137 : vector<8x128xf32>
    %139 = math.exp %138 : vector<8x128xf32>
    %cst_32 = arith.constant 1.000000e+00 : f32
    %140 = vector.broadcast %cst_32 : f32 to vector<8x128xf32>
    %141 = arith.addf %140, %139 : vector<8x128xf32>
    %142 = arith.divf %140, %141 : vector<8x128xf32>
    %143 = vector.extract_strided_slice %126 {offsets = [0, 256], sizes = [8, 128], strides = [1, 1]} : vector<8x384xf32> to vector<8x128xf32>
    %144 = vector.extract_strided_slice %125 {offsets = [0, 256], sizes = [8, 128], strides = [1, 1]} : vector<8x384xf32> to vector<8x128xf32>
    %145 = arith.addf %144, %71 : vector<8x128xf32>
    %146 = arith.mulf %134, %145 : vector<8x128xf32>
    %147 = arith.addf %143, %146 : vector<8x128xf32>
    %148 = math.tanh %147 : vector<8x128xf32>
    %cst_33 = arith.constant 1.000000e+00 : f32
    %149 = vector.broadcast %cst_33 : f32 to vector<8x128xf32>
    %150 = arith.subf %149, %142 : vector<8x128xf32>
    %151 = arith.mulf %150, %148 : vector<8x128xf32>
    %152 = arith.mulf %142, %123 : vector<8x128xf32>
    %153 = arith.addf %151, %152 : vector<8x128xf32>
    %154 = arith.truncf %153 : vector<8x128xf32> to vector<8x128xbf16>
    %cst_34 = arith.constant dense<0.000000e+00> : vector<8x384xf32>
    %155 = tpu.matmul %154, %1, %cst_34 {dimension_numbers = #tpu.dot_dimension_numbers<[1], [0], [0], [1], [0, 0, 1, 1], [], []>} : vector<8x128xbf16>, vector<128x384xbf16>, vector<8x384xf32> -> vector<8x384xf32>
    %156 = vector.extract_strided_slice %69 {offsets = [24, 0], sizes = [8, 384], strides = [1, 1]} : vector<48x384xf32> to vector<8x384xf32>
    %157 = vector.extract_strided_slice %156 {offsets = [0, 0], sizes = [8, 128], strides = [1, 1]} : vector<8x384xf32> to vector<8x128xf32>
    %158 = vector.extract_strided_slice %155 {offsets = [0, 0], sizes = [8, 128], strides = [1, 1]} : vector<8x384xf32> to vector<8x128xf32>
    %159 = arith.addf %157, %158 : vector<8x128xf32>
    %160 = arith.negf %159 : vector<8x128xf32>
    %161 = math.exp %160 : vector<8x128xf32>
    %cst_35 = arith.constant 1.000000e+00 : f32
    %162 = vector.broadcast %cst_35 : f32 to vector<8x128xf32>
    %163 = arith.addf %162, %161 : vector<8x128xf32>
    %164 = arith.divf %162, %163 : vector<8x128xf32>
    %165 = vector.extract_strided_slice %156 {offsets = [0, 128], sizes = [8, 128], strides = [1, 1]} : vector<8x384xf32> to vector<8x128xf32>
    %166 = vector.extract_strided_slice %155 {offsets = [0, 128], sizes = [8, 128], strides = [1, 1]} : vector<8x384xf32> to vector<8x128xf32>
    %167 = arith.addf %165, %166 : vector<8x128xf32>
    %168 = arith.negf %167 : vector<8x128xf32>
    %169 = math.exp %168 : vector<8x128xf32>
    %cst_36 = arith.constant 1.000000e+00 : f32
    %170 = vector.broadcast %cst_36 : f32 to vector<8x128xf32>
    %171 = arith.addf %170, %169 : vector<8x128xf32>
    %172 = arith.divf %170, %171 : vector<8x128xf32>
    %173 = vector.extract_strided_slice %156 {offsets = [0, 256], sizes = [8, 128], strides = [1, 1]} : vector<8x384xf32> to vector<8x128xf32>
    %174 = vector.extract_strided_slice %155 {offsets = [0, 256], sizes = [8, 128], strides = [1, 1]} : vector<8x384xf32> to vector<8x128xf32>
    %175 = arith.addf %174, %71 : vector<8x128xf32>
    %176 = arith.mulf %164, %175 : vector<8x128xf32>
    %177 = arith.addf %173, %176 : vector<8x128xf32>
    %178 = math.tanh %177 : vector<8x128xf32>
    %cst_37 = arith.constant 1.000000e+00 : f32
    %179 = vector.broadcast %cst_37 : f32 to vector<8x128xf32>
    %180 = arith.subf %179, %172 : vector<8x128xf32>
    %181 = arith.mulf %180, %178 : vector<8x128xf32>
    %182 = arith.mulf %172, %153 : vector<8x128xf32>
    %183 = arith.addf %181, %182 : vector<8x128xf32>
    %184 = arith.truncf %183 : vector<8x128xf32> to vector<8x128xbf16>
    %cst_38 = arith.constant dense<0.000000e+00> : vector<8x384xf32>
    %185 = tpu.matmul %184, %1, %cst_38 {dimension_numbers = #tpu.dot_dimension_numbers<[1], [0], [0], [1], [0, 0, 1, 1], [], []>} : vector<8x128xbf16>, vector<128x384xbf16>, vector<8x384xf32> -> vector<8x384xf32>
    %186 = vector.extract_strided_slice %69 {offsets = [32, 0], sizes = [8, 384], strides = [1, 1]} : vector<48x384xf32> to vector<8x384xf32>
    %187 = vector.extract_strided_slice %186 {offsets = [0, 0], sizes = [8, 128], strides = [1, 1]} : vector<8x384xf32> to vector<8x128xf32>
    %188 = vector.extract_strided_slice %185 {offsets = [0, 0], sizes = [8, 128], strides = [1, 1]} : vector<8x384xf32> to vector<8x128xf32>
    %189 = arith.addf %187, %188 : vector<8x128xf32>
    %190 = arith.negf %189 : vector<8x128xf32>
    %191 = math.exp %190 : vector<8x128xf32>
    %cst_39 = arith.constant 1.000000e+00 : f32
    %192 = vector.broadcast %cst_39 : f32 to vector<8x128xf32>
    %193 = arith.addf %192, %191 : vector<8x128xf32>
    %194 = arith.divf %192, %193 : vector<8x128xf32>
    %195 = vector.extract_strided_slice %186 {offsets = [0, 128], sizes = [8, 128], strides = [1, 1]} : vector<8x384xf32> to vector<8x128xf32>
    %196 = vector.extract_strided_slice %185 {offsets = [0, 128], sizes = [8, 128], strides = [1, 1]} : vector<8x384xf32> to vector<8x128xf32>
    %197 = arith.addf %195, %196 : vector<8x128xf32>
    %198 = arith.negf %197 : vector<8x128xf32>
    %199 = math.exp %198 : vector<8x128xf32>
    %cst_40 = arith.constant 1.000000e+00 : f32
    %200 = vector.broadcast %cst_40 : f32 to vector<8x128xf32>
    %201 = arith.addf %200, %199 : vector<8x128xf32>
    %202 = arith.divf %200, %201 : vector<8x128xf32>
    %203 = vector.extract_strided_slice %186 {offsets = [0, 256], sizes = [8, 128], strides = [1, 1]} : vector<8x384xf32> to vector<8x128xf32>
    %204 = vector.extract_strided_slice %185 {offsets = [0, 256], sizes = [8, 128], strides = [1, 1]} : vector<8x384xf32> to vector<8x128xf32>
    %205 = arith.addf %204, %71 : vector<8x128xf32>
    %206 = arith.mulf %194, %205 : vector<8x128xf32>
    %207 = arith.addf %203, %206 : vector<8x128xf32>
    %208 = math.tanh %207 : vector<8x128xf32>
    %cst_41 = arith.constant 1.000000e+00 : f32
    %209 = vector.broadcast %cst_41 : f32 to vector<8x128xf32>
    %210 = arith.subf %209, %202 : vector<8x128xf32>
    %211 = arith.mulf %210, %208 : vector<8x128xf32>
    %212 = arith.mulf %202, %183 : vector<8x128xf32>
    %213 = arith.addf %211, %212 : vector<8x128xf32>
    %214 = arith.truncf %213 : vector<8x128xf32> to vector<8x128xbf16>
    %cst_42 = arith.constant dense<0.000000e+00> : vector<8x384xf32>
    %215 = tpu.matmul %214, %1, %cst_42 {dimension_numbers = #tpu.dot_dimension_numbers<[1], [0], [0], [1], [0, 0, 1, 1], [], []>} : vector<8x128xbf16>, vector<128x384xbf16>, vector<8x384xf32> -> vector<8x384xf32>
    %216 = vector.extract_strided_slice %69 {offsets = [40, 0], sizes = [8, 384], strides = [1, 1]} : vector<48x384xf32> to vector<8x384xf32>
    %217 = vector.extract_strided_slice %216 {offsets = [0, 0], sizes = [8, 128], strides = [1, 1]} : vector<8x384xf32> to vector<8x128xf32>
    %218 = vector.extract_strided_slice %215 {offsets = [0, 0], sizes = [8, 128], strides = [1, 1]} : vector<8x384xf32> to vector<8x128xf32>
    %219 = arith.addf %217, %218 : vector<8x128xf32>
    %220 = arith.negf %219 : vector<8x128xf32>
    %221 = math.exp %220 : vector<8x128xf32>
    %cst_43 = arith.constant 1.000000e+00 : f32
    %222 = vector.broadcast %cst_43 : f32 to vector<8x128xf32>
    %223 = arith.addf %222, %221 : vector<8x128xf32>
    %224 = arith.divf %222, %223 : vector<8x128xf32>
    %225 = vector.extract_strided_slice %216 {offsets = [0, 128], sizes = [8, 128], strides = [1, 1]} : vector<8x384xf32> to vector<8x128xf32>
    %226 = vector.extract_strided_slice %215 {offsets = [0, 128], sizes = [8, 128], strides = [1, 1]} : vector<8x384xf32> to vector<8x128xf32>
    %227 = arith.addf %225, %226 : vector<8x128xf32>
    %228 = arith.negf %227 : vector<8x128xf32>
    %229 = math.exp %228 : vector<8x128xf32>
    %cst_44 = arith.constant 1.000000e+00 : f32
    %230 = vector.broadcast %cst_44 : f32 to vector<8x128xf32>
    %231 = arith.addf %230, %229 : vector<8x128xf32>
    %232 = arith.divf %230, %231 : vector<8x128xf32>
    %233 = vector.extract_strided_slice %216 {offsets = [0, 256], sizes = [8, 128], strides = [1, 1]} : vector<8x384xf32> to vector<8x128xf32>
    %234 = vector.extract_strided_slice %215 {offsets = [0, 256], sizes = [8, 128], strides = [1, 1]} : vector<8x384xf32> to vector<8x128xf32>
    %235 = arith.addf %234, %71 : vector<8x128xf32>
    %236 = arith.mulf %224, %235 : vector<8x128xf32>
    %237 = arith.addf %233, %236 : vector<8x128xf32>
    %238 = math.tanh %237 : vector<8x128xf32>
    %cst_45 = arith.constant 1.000000e+00 : f32
    %239 = vector.broadcast %cst_45 : f32 to vector<8x128xf32>
    %240 = arith.subf %239, %232 : vector<8x128xf32>
    %241 = arith.mulf %240, %238 : vector<8x128xf32>
    %242 = arith.mulf %232, %213 : vector<8x128xf32>
    %243 = arith.addf %241, %242 : vector<8x128xf32>
    %244 = arith.truncf %243 : vector<8x128xf32> to vector<8x128xbf16>
    %cst_46 = arith.constant dense<0.000000e+00> : vector<8x384xf32>
    %245 = tpu.matmul %244, %1, %cst_46 {dimension_numbers = #tpu.dot_dimension_numbers<[1], [0], [0], [1], [0, 0, 1, 1], [], []>} : vector<8x128xbf16>, vector<128x384xbf16>, vector<8x384xf32> -> vector<8x384xf32>
    %246 = tpu.concatenate %245, %245 in 0 : vector<8x384xf32>, vector<8x384xf32> -> vector<16x384xf32>
    %247 = tpu.concatenate %243, %243 in 0 : vector<8x128xf32>, vector<8x128xf32> -> vector<16x128xf32>
    %248 = vector.extract_strided_slice %10 {offsets = [0, 0], sizes = [16, 128], strides = [1, 1]} : vector<16x384xf32> to vector<16x128xf32>
    %249 = vector.extract_strided_slice %246 {offsets = [0, 0], sizes = [16, 128], strides = [1, 1]} : vector<16x384xf32> to vector<16x128xf32>
    %250 = arith.addf %248, %249 : vector<16x128xf32>
    %251 = arith.negf %250 : vector<16x128xf32>
    %252 = math.exp %251 : vector<16x128xf32>
    %cst_47 = arith.constant 1.000000e+00 : f32
    %253 = vector.broadcast %cst_47 : f32 to vector<16x128xf32>
    %254 = arith.addf %253, %252 : vector<16x128xf32>
    %255 = arith.divf %253, %254 : vector<16x128xf32>
    %256 = vector.extract_strided_slice %10 {offsets = [0, 128], sizes = [16, 128], strides = [1, 1]} : vector<16x384xf32> to vector<16x128xf32>
    %257 = vector.extract_strided_slice %246 {offsets = [0, 128], sizes = [16, 128], strides = [1, 1]} : vector<16x384xf32> to vector<16x128xf32>
    %258 = arith.addf %256, %257 : vector<16x128xf32>
    %259 = arith.negf %258 : vector<16x128xf32>
    %260 = math.exp %259 : vector<16x128xf32>
    %cst_48 = arith.constant 1.000000e+00 : f32
    %261 = vector.broadcast %cst_48 : f32 to vector<16x128xf32>
    %262 = arith.addf %261, %260 : vector<16x128xf32>
    %263 = arith.divf %261, %262 : vector<16x128xf32>
    %264 = vector.extract_strided_slice %10 {offsets = [0, 256], sizes = [16, 128], strides = [1, 1]} : vector<16x384xf32> to vector<16x128xf32>
    %265 = vector.extract_strided_slice %246 {offsets = [0, 256], sizes = [16, 128], strides = [1, 1]} : vector<16x384xf32> to vector<16x128xf32>
    %266 = arith.addf %265, %73 : vector<16x128xf32>
    %267 = arith.mulf %255, %266 : vector<16x128xf32>
    %268 = arith.addf %264, %267 : vector<16x128xf32>
    %269 = math.tanh %268 : vector<16x128xf32>
    %cst_49 = arith.constant 1.000000e+00 : f32
    %270 = vector.broadcast %cst_49 : f32 to vector<16x128xf32>
    %271 = arith.subf %270, %263 : vector<16x128xf32>
    %272 = arith.mulf %271, %269 : vector<16x128xf32>
    %273 = arith.mulf %263, %247 : vector<16x128xf32>
    %274 = arith.addf %272, %273 : vector<16x128xf32>
    %275 = arith.truncf %274 : vector<16x128xf32> to vector<16x128xbf16>
    %cst_50 = arith.constant dense<0.000000e+00> : vector<16x16xf32>
    %276 = tpu.matmul %275, %3, %cst_50 {dimension_numbers = #tpu.dot_dimension_numbers<[1], [0], [0], [1], [0, 0, 1, 1], [], []>} : vector<16x128xbf16>, vector<128x16xbf16>, vector<16x16xf32> -> vector<16x16xf32>
    %277 = vector.broadcast %7 : vector<1x16xf32> to vector<16x16xf32>
    %278 = arith.addf %276, %277 : vector<16x16xf32>
    %279 = tpu.concatenate %54, %54 in 0 : vector<8x1xf32>, vector<8x1xf32> -> vector<16x1xf32>
    %280 = tpu.concatenate %26, %26 in 0 : vector<8x1xf32>, vector<8x1xf32> -> vector<16x1xf32>
    %281 = vector.broadcast %8 : vector<1x1xf32> to vector<16x1xf32>
    %282 = arith.mulf %280, %281 : vector<16x1xf32>
    %283 = vector.broadcast %9 : vector<1x1xf32> to vector<16x1xf32>
    %284 = arith.addf %282, %283 : vector<16x1xf32>
    %285 = vector.broadcast %279 : vector<16x1xf32> to vector<16x16xf32>
    %286 = arith.mulf %278, %285 : vector<16x16xf32>
    %287 = vector.broadcast %284 : vector<16x1xf32> to vector<16x16xf32>
    %288 = arith.addf %286, %287 : vector<16x16xf32>
    %c0_51 = arith.constant 0 : index
    %c0_52 = arith.constant 0 : index
    %289 = vector.load %arg4[%c0_51, %c0_52] : memref<16x16xf32, #tpu.memory_space<vmem>>, vector<16x16xf32>
    tpu.vector_store %arg4[%c0_51, %c0_52], %288 {strides = array<i32>} : memref<16x16xf32, #tpu.memory_space<vmem>>, vector<16x16xf32>,
    return
  }
  func.func @transform_0(%arg0: i32) -> (i32, i32) {
    %c0_i32 = arith.constant 0 : i32
    %c0_i32_0 = arith.constant 0 : i32
    %c0_i32_1 = arith.constant 0 : i32
    return %c0_i32, %c0_i32_0 : i32, i32
  }
  func.func @transform_1(%arg0: i32) -> (i32, i32) {
    %c0_i32 = arith.constant 0 : i32
    %c0_i32_0 = arith.constant 0 : i32
    %c0_i32_1 = arith.constant 0 : i32
    return %c0_i32, %c0_i32_0 : i32, i32
  }
  func.func @transform_2(%arg0: i32) -> (i32, i32) {
    %c0_i32 = arith.constant 0 : i32
    %c0_i32_0 = arith.constant 0 : i32
    %c0_i32_1 = arith.constant 0 : i32
    return %c0_i32, %c0_i32_0 : i32, i32
  }
  func.func @transform_3(%arg0: i32) -> (i32, i32) {
    %c0_i32 = arith.constant 0 : i32
    %c0_i32_0 = arith.constant 0 : i32
    %c0_i32_1 = arith.constant 0 : i32
    return %c0_i32, %c0_i32_0 : i32, i32
  }
}

</mosaic_0001>

<llo_original>
// kernel: ensemble_forward.1
$region0: #{ensemble_forward.1}
  #allocation0 [shape = 'u32[]', space=smem, size = 0x4, offset = 0x4, fixed_abs, tag = 'smem constant byte address 0x4 - core index']
  #allocation1 [shape = 'u32[72,128]{1,0:T(1,128)}', space=vmem, size = 0x9000, scoped, tag = 'internal scratch']
  %s0 = inlined_call_operand.vmem [shape: f32[48,16], index: 0, kind: input, shape index: {}]
  %s1 = inlined_call_operand.hbm [shape: bf16[400,384], index: 1, kind: input, shape index: {}]
  %s2 = inlined_call_operand.vmem [shape: f32[24,384], index: 2, kind: input, shape index: {}]
  %s3 = inlined_call_operand.vmem [shape: f32[16,16], index: 3, kind: output, shape index: {}]
  %s4 = sld [smem:[#allocation0]]
  $region26: #{ensemble_forward.1} parent=0
    _
  %s6 = ssub.s32 1, %s4
  %s7 = scalar_select 0, %s6, %s4
  $region1: #{ensemble_forward.1} parent=0
    #allocation2 [shape = 'u8[307200]{0}', space=vmem, size = 0x4b000, scoped, tag = 'input window, operand 1, single buffered']
    #allocation3 [shape = 's32[1]{0}', space=sflag, size = 0x4, scoped, tag = 'scoped memory for ensemble_forward.1']
    %8 = vsyncpa [#allocation3], 0
    // Predicated region
    $region2: #{ensemble_forward.1} parent=1 // pred_check
      _
    $region3: #{ensemble_forward.1} parent=1 // pred_check_branch
      %10 = sbr.rel (0) target = $region5
    $region4: #{ensemble_forward.1} parent=1 // pred_region
      _
    $region5: #{ensemble_forward.1} parent=1 // pred_fallthru
      _
    // Predicated region
    $region6: #{ensemble_forward.1} parent=1 // pred_check
      _
    $region7: #{ensemble_forward.1} parent=1 // pred_check_branch
      %12 = sbr.rel (0) target = $region9
    $region8: #{ensemble_forward.1} parent=1 // pred_region
      %14 = vsyncadd [#allocation3], 0
      %s15 = sshll.u32 %s1, 4
      %s16 = int_to_ptr.hbm [resolvable:$true] %s15
      %s17 = sshll.u32 [#allocation2], 4
      %s18 = int_to_ptr.vmem [resolvable:$true] %s17
      %23 = dma.hbm_to_vmem [thread:$0]  %s16, 9600, %s18, [#allocation3], 192, 192, 12
    $region9: #{ensemble_forward.1} parent=1 // pred_fallthru
      _
    // Predicated region
    $region10: #{ensemble_forward.1} parent=1 // pred_check
      _
    $region11: #{ensemble_forward.1} parent=1 // pred_check_branch
      %25 = sbr.rel (0) target = $region13
    $region12: #{ensemble_forward.1} parent=1 // pred_region
      _
    $region13: #{ensemble_forward.1} parent=1 // pred_fallthru
      _
    // Predicated region
    $region14: #{ensemble_forward.1} parent=1 // pred_check
      _
    $region15: #{ensemble_forward.1} parent=1 // pred_check_branch
      %27 = sbr.rel (0) target = $region17
    $region16: #{ensemble_forward.1} parent=1 // pred_region
      %29 = dma.done [#allocation3], 9600
    $region17: #{ensemble_forward.1} parent=1 // pred_fallthru
      _
    %v31 = vld [vmem:[#allocation2] sm:$0xff]
    %v32 = vld [vmem:[#allocation2 + $0x8] sm:$0xf]
    %v33 = vld [vmem:[#allocation2 + $0xc] sm:$0xff]
    %v34 = vld [vmem:[#allocation2 + $0x14] sm:$0xf]
    %v35 = vld [vmem:[#allocation2 + $0x18] sm:$0xff]
    %v36 = vld [vmem:[#allocation2 + $0x20] sm:$0xf]
    %v37 = vld [vmem:[#allocation2 + $0x24] sm:$0xff]
    %v38 = vld [vmem:[#allocation2 + $0x2c] sm:$0xf]
    %v39 = vld [vmem:[#allocation2 + $0x30] sm:$0xff]
    %v40 = vld [vmem:[#allocation2 + $0x38] sm:$0xf]
    %v41 = vld [vmem:[#allocation2 + $0x3c] sm:$0xff]
    %v42 = vld [vmem:[#allocation2 + $0x44] sm:$0xf]
    %v43 = vld [vmem:[#allocation2 + $0x48] sm:$0xff]
    %v44 = vld [vmem:[#allocation2 + $0x50] sm:$0xf]
    %v45 = vld [vmem:[#allocation2 + $0x54] sm:$0xff]
    %v46 = vld [vmem:[#allocation2 + $0x5c] sm:$0xf]
    %v47 = vld [vmem:[#allocation2 + $0x60] sm:$0xff]
    %v48 = vld [vmem:[#allocation2 + $0x68] sm:$0xf]
    %v49 = vld [vmem:[#allocation2 + $0x6c] sm:$0xff]
    %v50 = vld [vmem:[#allocation2 + $0x74] sm:$0xf]
    %v51 = vld [vmem:[#allocation2 + $0x78] sm:$0xff]
    %v52 = vld [vmem:[#allocation2 + $0x80] sm:$0xf]
    %v53 = vld [vmem:[#allocation2 + $0x84] sm:$0xff]
    %v54 = vld [vmem:[#allocation2 + $0x8c] sm:$0xf]
    %v55 = vld [vmem:[#allocation2 + $0x90] sm:$0xff]
    %v56 = vld [vmem:[#allocation2 + $0x98] sm:$0xf]
    %v57 = vld [vmem:[#allocation2 + $0x9c] sm:$0xff]
    %v58 = vld [vmem:[#allocation2 + $0xa4] sm:$0xf]
    %v59 = vld [vmem:[#allocation2 + $0xa8] sm:$0xff]
    %v60 = vld [vmem:[#allocation2 + $0xb0] sm:$0xf]
    %v61 = vld [vmem:[#allocation2 + $0xb4] sm:$0xff]
    %v62 = vld [vmem:[#allocation2 + $0xbc] sm:$0xf]
    %v63 = vld [vmem:[#allocation2 + $0xc0] sm:$0xff]
    %v64 = vld [vmem:[#allocation2 + $0xc8] sm:$0xf]
    %v65 = vld [vmem:[#allocation2 + $0xcc] sm:$0xff]
    %v66 = vld [vmem:[#allocation2 + $0xd4] sm:$0xf]
    %v67 = vld [vmem:[#allocation2 + $0xd8] sm:$0xff]
    %v68 = vld [vmem:[#allocation2 + $0xe0] sm:$0xf]
    %v69 = vld [vmem:[#allocation2 + $0xe4] sm:$0xff]
    %v70 = vld [vmem:[#allocation2 + $0xec] sm:$0xf]
    %v71 = vld [vmem:[#allocation2 + $0xf0] sm:$0xff]
    %v72 = vld [vmem:[#allocation2 + $0xf8] sm:$0xf]
    %v73 = vld [vmem:[#allocation2 + $0xfc] sm:$0xff]
    %v74 = vld [vmem:[#allocation2 + $0x104] sm:$0xf]
    %v75 = vld [vmem:[#allocation2 + $0x108] sm:$0xff]
    %v76 = vld [vmem:[#allocation2 + $0x110] sm:$0xf]
    %v77 = vld [vmem:[#allocation2 + $0x114] sm:$0xff]
    %v78 = vld [vmem:[#allocation2 + $0x11c] sm:$0xf]
    %v79 = vld [vmem:[#allocation2 + $0x120] sm:$0xff]
    %v80 = vld [vmem:[#allocation2 + $0x128] sm:$0xf]
    %v81 = vld [vmem:[#allocation2 + $0x12c] sm:$0xff]
    %v82 = vld [vmem:[#allocation2 + $0x134] sm:$0xf]
    %v83 = vld [vmem:[#allocation2 + $0x138] sm:$0xff]
    %v84 = vld [vmem:[#allocation2 + $0x140] sm:$0xf]
    %v85 = vld [vmem:[#allocation2 + $0x144] sm:$0xff]
    %v86 = vld [vmem:[#allocation2 + $0x14c] sm:$0xf]
    %v87 = vld [vmem:[#allocation2 + $0x150] sm:$0xff]
    %v88 = vld [vmem:[#allocation2 + $0x158] sm:$0xf]
    %v89 = vld [vmem:[#allocation2 + $0x15c] sm:$0xff]
    %v90 = vld [vmem:[#allocation2 + $0x164] sm:$0xf]
    %v91 = vld [vmem:[#allocation2 + $0x168] sm:$0xff]
    %v92 = vld [vmem:[#allocation2 + $0x170] sm:$0xf]
    %v93 = vld [vmem:[#allocation2 + $0x174] sm:$0xff]
    %v94 = vld [vmem:[#allocation2 + $0x17c] sm:$0xf]
    %v95 = vld [vmem:[#allocation2 + $0x180] sm:$0xf]
    %v96 = vld [vmem:[#allocation2 + $0x18c] sm:$0xf]
    %v97 = vld [vmem:[#allocation2 + $0x198] sm:$0xf]
    %v98 = vld [vmem:[#allocation2 + $0x1a4] sm:$0xf]
    %v99 = vld [vmem:[#allocation2 + $0x1b0] sm:$0xf]
    %v100 = vld [vmem:[#allocation2 + $0x1bc] sm:$0xf]
    %v101 = vld [vmem:[#allocation2 + $0x1c8] sm:$0xf]
    %v102 = vld [vmem:[#allocation2 + $0x1d4] sm:$0xf]
    %v103 = vld [vmem:[#allocation2 + $0x1e0] sm:$0xf]
    %v104 = vld [vmem:[#allocation2 + $0x1ec] sm:$0xf]
    %v105 = vld [vmem:[#allocation2 + $0x1f8] sm:$0xf]
    %v106 = vld [vmem:[#allocation2 + $0x204] sm:$0xf]
    %v107 = vld [vmem:[#allocation2 + $0x210] sm:$0xf]
    %v108 = vld [vmem:[#allocation2 + $0x21c] sm:$0xf]
    %v109 = vld [vmem:[#allocation2 + $0x228] sm:$0xf]
    %v110 = vld [vmem:[#allocation2 + $0x234] sm:$0xf]
    %v111 = vld [vmem:[#allocation2 + $0x240] sm:$0xf]
    %v112 = vld [vmem:[#allocation2 + $0x24c] sm:$0xf]
    %v113 = vld [vmem:[%s2] ss:$8 sm:$0x7]
    %v114 = vld [vmem:[%s2 + $0x1] ss:$0 sm:$0xff]
    %v115 = vld [vmem:[%s2 + $0x2] ss:$0 sm:$0xff]
    %v116 = vld [vmem:[%s2 + $0x3] ss:$0 sm:$0xff]
    %v117 = vld [vmem:[%s2 + $0x4] ss:$0 sm:$0xff]
    %v118 = vld [vmem:[%s2 + $0x18] sm:$0xff]
    %v119 = vld [vmem:[%s2 + $0x20] sm:$0xff]
    %v120 = vld [vmem:[%s2 + $0x28] sm:$0xff]
    %v121 = vld [vmem:[%s2 + $0x30] sm:$0xff]
    %v122 = vld [vmem:[%s2 + $0x38] sm:$0xff]
    %v123 = vld [vmem:[%s2 + $0x40] sm:$0xff]
    %v124 = vld [vmem:[%s0] sm:$0xff]
    %v125 = vld [vmem:[%s0 + $0x8] sm:$0xff]
    %v126 = vld [vmem:[%s0 + $0x10] sm:$0xff]
    %v127 = vld [vmem:[%s0 + $0x18] sm:$0xff]
    %v128 = vld [vmem:[%s0 + $0x20] sm:$0xff]
    %v129 = vld [vmem:[%s0 + $0x28] sm:$0xff]
    %v130 = vadd.f32 %v124, %v125
    %v131 = vadd.f32 %v130, %v126
    %v132 = vadd.f32 %v131, %v127
    %v133 = vadd.f32 %v132, %v128
    %v134 = vadd.f32 %v133, %v129
    %vm135 = vcmask 130048
    %v136 = vsel %vm135, %v134, 0.0
    %137 = vadd.xlane.f32.xlu0 %v136
    %v138 = vpop.xlane.xlu0 %137
    %v139 = vmul.f32 %v138, 0.010416667
    %141 = vset.pattern.permute.xlu0 0
    %142 = vperm.xlu0 %141, %v139
    %v143 = vpop.permute.xlu0 %142
    %v145 = vsub.f32 %v124, %v143
    %v146 = vsub.f32 %v125, %v143
    %v147 = vsub.f32 %v126, %v143
    %v148 = vsub.f32 %v127, %v143
    %v149 = vsub.f32 %v128, %v143
    %v150 = vsub.f32 %v129, %v143
    %v151 = vmul.f32 %v145, %v145
    %v152 = vmul.f32 %v146, %v146
    %v153 = vadd.f32 %v151, %v152
    %v154 = vmul.f32 %v147, %v147
    %v155 = vadd.f32 %v153, %v154
    %v156 = vmul.f32 %v148, %v148
    %v157 = vadd.f32 %v155, %v156
    %v158 = vmul.f32 %v149, %v149
    %v159 = vadd.f32 %v157, %v158
    %v160 = vmul.f32 %v150, %v150
    %v161 = vadd.f32 %v159, %v160
    %v162 = vsel %vm135, %v161, 0.0
    %163 = vadd.xlane.f32.xlu0 %v162
    %v164 = vpop.xlane.xlu0 %163
    %v165 = vmul.f32 %v164, 0.010416667
    %v166 = vadd.f32 %v165, 1e-05
    %v167 = vrsqrt.pop %v166
    %v168 = vmul.f32 %v167, %v166
    %v169 = vmul.f32 %v168, %v167
    %v170 = vmul.f32 0.5, %v169
    %v171 = vsub.f32 1.5, %v170
    %v172 = vmul.f32 %v167, %v171
    %v173 = vmul.f32 %v166, %v172
    %vm174 = vcmp.eq.f32.partialorder %v166, inf
    %v175 = vsel %vm174, %v166, %v173
    %vm176 = vcmp.eq.f32.partialorder %v166, 0.0
    %v177 = vand.u32 %v166, 2147483648
    %v178 = vsel %vm176, %v177, %v175
    %v179 = vrcp.pop %v178
    %v180 = vmul.f32 %v178, %v179
    %v181 = vsub.f32 1.0, %v180
    %v182 = vmul.f32 %v179, %v181
    %v183 = vadd.f32 %v179, %v182
    %vm184 = vweird.f32 %v178
    %vm185 = vweird.f32 %v179
    %vm186 = vmor %vm184, %vm185
    %v187 = vsel %vm186, %v179, %v183
    %v188 = vand.u32 2147483647, %v178
    %vm189 = vcmp.eq.f32.partialorder %v188, 8.507059e+37
    %v190 = vand.u32 %v178, 2147483648
    %v191 = vor.u32 1.1754944e-38, %v190
    %v192 = vsel %vm189, %v191, %v187
    %v193 = vmul.f32 1.0, %v192
    %195 = vset.pattern.permute.xlu0 0
    %196 = vperm.xlu0 %195, %v193
    %v197 = vpop.permute.xlu0 %196
    %v199 = vmul.f32 %v145, %v197
    %v200 = vmul.f32 %v146, %v197
    %v201 = vmul.f32 %v147, %v197
    %v202 = vmul.f32 %v148, %v197
    %v203 = vmul.f32 %v149, %v197
    %v204 = vmul.f32 %v150, %v197
    %v205 = vpack.c.bf16 %v200, %v199
    %v206 = vpack.c.bf16 %v202, %v201
    %v207 = vpack.c.bf16 %v204, %v203
    %v210 = vunpack.c.l.b16 %v95
    %v211 = vunpack.c.l.b16 %v96
    %v212 = vpack.c.b16 %v211, %v210
    %v215 = vsel %vm135, %v205, 0
    %v218 = vsel %vm135, %v206, 0
    %v221 = vsel %vm135, %v207, 0
    %223 = vmatpush.bf16.msra.mxu0 0
    %224 = vmatpush.bf16.msra.mxu0 0
    %225 = vmatpush.bf16.msra.mxu0 0
    %226 = vmatpush.bf16.msra.mxu0 0
    %227 = vmatpush.bf16.msra.mxu0 0
    %228 = vmatpush.bf16.msra.mxu0 0
    %229 = vmatpush.bf16.msra.mxu0 0
    %230 = vmatpush.bf16.msra.mxu0 %v212
    %231 = vmatmul.bf16.gmra.mxu0 %v215
    %v232 = vpop.f32.mrf.mxu0
    %v233 = vadd.f32 %v114, %v232
    %v234 = vpop.f32.mrf.mxu0
    %v235 = vadd.f32 %v114, %v234
    %236 = vmatmul.bf16.gmra.mxu0 %v218
    %v237 = vpop.f32.mrf.mxu0
    %v238 = vadd.f32 %v114, %v237
    %v239 = vpop.f32.mrf.mxu0
    %v240 = vadd.f32 %v114, %v239
    %241 = vmatmul.bf16.gmra.mxu0 %v221
    %v242 = vpop.f32.mrf.mxu0
    %v243 = vadd.f32 %v114, %v242
    %v244 = vpop.f32.mrf.mxu0
    %v245 = vadd.f32 %v114, %v244
    %246 = vdwg.mxu0
    %v247 = vmax.f32 %v233, 0.0
    %v248 = vmax.f32 %v235, 0.0
    %v249 = vmax.f32 %v238, 0.0
    %v250 = vmax.f32 %v240, 0.0
    %v251 = vmax.f32 %v243, 0.0
    %v252 = vmax.f32 %v245, 0.0
    %v253 = vpack.c.bf16 %v248, %v247
    %v254 = vpack.c.bf16 %v250, %v249
    %v255 = vpack.c.bf16 %v252, %v251
    %v257 = vperm.slane %v113, 0
    %v258 = vperm.slane %v113, 1
    %v259 = vperm.slane %v113, 2
    %v295 = vunpack.c.l.b16 %v31
    %v296 = vunpack.c.h.b16 %v31
    %v297 = vunpack.c.l.b16 %v32
    %v298 = vunpack.c.l.b16 %v33
    %v299 = vunpack.c.h.b16 %v33
    %v300 = vunpack.c.l.b16 %v34
    %v301 = vunpack.c.l.b16 %v35
    %v302 = vunpack.c.h.b16 %v35
    %v303 = vunpack.c.l.b16 %v36
    %v304 = vunpack.c.l.b16 %v37
    %v305 = vunpack.c.h.b16 %v37
    %v306 = vunpack.c.l.b16 %v38
    %v307 = vunpack.c.l.b16 %v39
    %v308 = vunpack.c.h.b16 %v39
    %v309 = vunpack.c.l.b16 %v40
    %v310 = vunpack.c.l.b16 %v41
    %v311 = vunpack.c.h.b16 %v41
    %v312 = vunpack.c.l.b16 %v42
    %v313 = vunpack.c.l.b16 %v43
    %v314 = vunpack.c.h.b16 %v43
    %v315 = vunpack.c.l.b16 %v44
    %v316 = vunpack.c.l.b16 %v45
    %v317 = vunpack.c.h.b16 %v45
    %v318 = vunpack.c.l.b16 %v46
    %v319 = vunpack.c.l.b16 %v47
    %v320 = vunpack.c.h.b16 %v47
    %v321 = vunpack.c.l.b16 %v48
    %v322 = vunpack.c.l.b16 %v49
    %v323 = vunpack.c.h.b16 %v49
    %v324 = vunpack.c.l.b16 %v50
    %v325 = vunpack.c.l.b16 %v51
    %v326 = vunpack.c.h.b16 %v51
    %v327 = vunpack.c.l.b16 %v52
    %v328 = vunpack.c.l.b16 %v53
    %v329 = vunpack.c.h.b16 %v53
    %v330 = vunpack.c.l.b16 %v54
    %v331 = vunpack.c.l.b16 %v55
    %v332 = vunpack.c.h.b16 %v55
    %v333 = vunpack.c.l.b16 %v56
    %v334 = vunpack.c.l.b16 %v57
    %v335 = vunpack.c.h.b16 %v57
    %v336 = vunpack.c.l.b16 %v58
    %v337 = vunpack.c.l.b16 %v59
    %v338 = vunpack.c.h.b16 %v59
    %v339 = vunpack.c.l.b16 %v60
    %v340 = vunpack.c.l.b16 %v61
    %v341 = vunpack.c.h.b16 %v61
    %v342 = vunpack.c.l.b16 %v62
    %v343 = vpack.c.b16 %v298, %v295
    %v344 = vpack.c.b16 %v299, %v296
    %v345 = vpack.c.b16 %v300, %v297
    %v346 = vpack.c.b16 %v304, %v301
    %v347 = vpack.c.b16 %v305, %v302
    %v348 = vpack.c.b16 %v306, %v303
    %v349 = vpack.c.b16 %v310, %v307
    %v350 = vpack.c.b16 %v311, %v308
    %v351 = vpack.c.b16 %v312, %v309
    %v352 = vpack.c.b16 %v316, %v313
    %v353 = vpack.c.b16 %v317, %v314
    %v354 = vpack.c.b16 %v318, %v315
    %v355 = vpack.c.b16 %v322, %v319
    %v356 = vpack.c.b16 %v323, %v320
    %v357 = vpack.c.b16 %v324, %v321
    %v358 = vpack.c.b16 %v328, %v325
    %v359 = vpack.c.b16 %v329, %v326
    %v360 = vpack.c.b16 %v330, %v327
    %v361 = vpack.c.b16 %v334, %v331
    %v362 = vpack.c.b16 %v335, %v332
    %v363 = vpack.c.b16 %v336, %v333
    %v364 = vpack.c.b16 %v340, %v337
    %v365 = vpack.c.b16 %v341, %v338
    %v366 = vpack.c.b16 %v342, %v339
    %391 = vmatpush.bf16.msra.mxu0 %v364
    %392 = vmatpush.bf16.msra.mxu0 %v361
    %393 = vmatpush.bf16.msra.mxu0 %v358
    %394 = vmatpush.bf16.msra.mxu0 %v355
    %395 = vmatpush.bf16.msra.mxu0 %v352
    %396 = vmatpush.bf16.msra.mxu0 %v349
    %397 = vmatpush.bf16.msra.mxu0 %v346
    %398 = vmatpush.bf16.msra.mxu0 %v343
    %399 = vmatmul.bf16.gmra.mxu0 %v253
    %v400 = vpop.f32.mrf.mxu0
    %v401 = vadd.f32 %v257, %v400
    %v402 = vpop.f32.mrf.mxu0
    %v403 = vadd.f32 %v257, %v402
    %404 = vmatmul.bf16.gmra.mxu0 %v254
    %v405 = vpop.f32.mrf.mxu0
    %v406 = vadd.f32 %v257, %v405
    %v407 = vpop.f32.mrf.mxu0
    %v408 = vadd.f32 %v257, %v407
    %409 = vmatmul.bf16.gmra.mxu0 %v255
    %v410 = vpop.f32.mrf.mxu0
    %v411 = vadd.f32 %v257, %v410
    %v412 = vpop.f32.mrf.mxu0
    %v413 = vadd.f32 %v257, %v412
    %414 = vdwg.mxu0
    %415 = vmatpush.bf16.msra.mxu0 %v365
    %416 = vmatpush.bf16.msra.mxu0 %v362
    %417 = vmatpush.bf16.msra.mxu0 %v359
    %418 = vmatpush.bf16.msra.mxu0 %v356
    %419 = vmatpush.bf16.msra.mxu0 %v353
    %420 = vmatpush.bf16.msra.mxu0 %v350
    %421 = vmatpush.bf16.msra.mxu0 %v347
    %422 = vmatpush.bf16.msra.mxu0 %v344
    %423 = vmatmul.bf16.gmra.mxu0 %v253
    %v424 = vpop.f32.mrf.mxu0
    %v425 = vadd.f32 %v258, %v424
    %v426 = vpop.f32.mrf.mxu0
    %v427 = vadd.f32 %v258, %v426
    %428 = vmatmul.bf16.gmra.mxu0 %v254
    %v429 = vpop.f32.mrf.mxu0
    %v430 = vadd.f32 %v258, %v429
    %v431 = vpop.f32.mrf.mxu0
    %v432 = vadd.f32 %v258, %v431
    %433 = vmatmul.bf16.gmra.mxu0 %v255
    %v434 = vpop.f32.mrf.mxu0
    %v435 = vadd.f32 %v258, %v434
    %v436 = vpop.f32.mrf.mxu0
    %v437 = vadd.f32 %v258, %v436
    %438 = vdwg.mxu0
    %439 = vmatpush.bf16.msra.mxu0 %v366
    %440 = vmatpush.bf16.msra.mxu0 %v363
    %441 = vmatpush.bf16.msra.mxu0 %v360
    %442 = vmatpush.bf16.msra.mxu0 %v357
    %443 = vmatpush.bf16.msra.mxu0 %v354
    %444 = vmatpush.bf16.msra.mxu0 %v351
    %445 = vmatpush.bf16.msra.mxu0 %v348
    %446 = vmatpush.bf16.msra.mxu0 %v345
    %447 = vmatmul.bf16.gmra.mxu0 %v253
    %v448 = vpop.f32.mrf.mxu0
    %v449 = vadd.f32 %v259, %v448
    %v450 = vpop.f32.mrf.mxu0
    %v451 = vadd.f32 %v259, %v450
    %452 = vmatmul.bf16.gmra.mxu0 %v254
    %v453 = vpop.f32.mrf.mxu0
    %v454 = vadd.f32 %v259, %v453
    %v455 = vpop.f32.mrf.mxu0
    %v456 = vadd.f32 %v259, %v455
    %457 = vmatmul.bf16.gmra.mxu0 %v255
    %v458 = vpop.f32.mrf.mxu0
    %v459 = vadd.f32 %v259, %v458
    %v460 = vpop.f32.mrf.mxu0
    %v461 = vadd.f32 %v259, %v460
    %462 = vdwg.mxu0
    %v463 = vxor.u32 %v401, 2147483648
    %v464 = vmul.f32 %v463, 1.442695
    %v465 = vpow.pop %v464
    %v466 = vadd.f32 %v465, 1.0
    %v467 = vrcp.pop %v466
    %v468 = vmul.f32 %v466, %v467
    %v469 = vsub.f32 1.0, %v468
    %v470 = vmul.f32 %v467, %v469
    %v471 = vadd.f32 %v467, %v470
    %vm472 = vweird.f32 %v466
    %vm473 = vweird.f32 %v467
    %vm474 = vmor %vm472, %vm473
    %v475 = vsel %vm474, %v467, %v471
    %v476 = vand.u32 2147483647, %v466
    %vm477 = vcmp.eq.f32.partialorder %v476, 8.507059e+37
    %v478 = vand.u32 %v466, 2147483648
    %v479 = vor.u32 1.1754944e-38, %v478
    %v480 = vsel %vm477, %v479, %v475
    %v481 = vmul.f32 1.0, %v480
    %v482 = vxor.u32 %v425, 2147483648
    %v483 = vmul.f32 %v482, 1.442695
    %v484 = vpow.pop %v483
    %v485 = vadd.f32 %v484, 1.0
    %v486 = vrcp.pop %v485
    %v487 = vmul.f32 %v485, %v486
    %v488 = vsub.f32 1.0, %v487
    %v489 = vmul.f32 %v486, %v488
    %v490 = vadd.f32 %v486, %v489
    %vm491 = vweird.f32 %v485
    %vm492 = vweird.f32 %v486
    %vm493 = vmor %vm491, %vm492
    %v494 = vsel %vm493, %v486, %v490
    %v495 = vand.u32 2147483647, %v485
    %vm496 = vcmp.eq.f32.partialorder %v495, 8.507059e+37
    %v497 = vand.u32 %v485, 2147483648
    %v498 = vor.u32 1.1754944e-38, %v497
    %v499 = vsel %vm496, %v498, %v494
    %v500 = vmul.f32 1.0, %v499
    %v501 = vmul.f32 %v481, %v115
    %v502 = vadd.f32 %v449, %v501
    %v503 = vtanh.pop %v502
    %v504 = vsub.f32 1.0, %v500
    %v505 = vmul.f32 %v504, %v503
    %v506 = vpack.c.bf16 %v505, %v505
    %v539 = vunpack.c.l.b16 %v63
    %v540 = vunpack.c.h.b16 %v63
    %v541 = vunpack.c.l.b16 %v64
    %v542 = vunpack.c.l.b16 %v65
    %v543 = vunpack.c.h.b16 %v65
    %v544 = vunpack.c.l.b16 %v66
    %v545 = vunpack.c.l.b16 %v67
    %v546 = vunpack.c.h.b16 %v67
    %v547 = vunpack.c.l.b16 %v68
    %v548 = vunpack.c.l.b16 %v69
    %v549 = vunpack.c.h.b16 %v69
    %v550 = vunpack.c.l.b16 %v70
    %v551 = vunpack.c.l.b16 %v71
    %v552 = vunpack.c.h.b16 %v71
    %v553 = vunpack.c.l.b16 %v72
    %v554 = vunpack.c.l.b16 %v73
    %v555 = vunpack.c.h.b16 %v73
    %v556 = vunpack.c.l.b16 %v74
    %v557 = vunpack.c.l.b16 %v75
    %v558 = vunpack.c.h.b16 %v75
    %v559 = vunpack.c.l.b16 %v76
    %v560 = vunpack.c.l.b16 %v77
    %v561 = vunpack.c.h.b16 %v77
    %v562 = vunpack.c.l.b16 %v78
    %v563 = vunpack.c.l.b16 %v79
    %v564 = vunpack.c.h.b16 %v79
    %v565 = vunpack.c.l.b16 %v80
    %v566 = vunpack.c.l.b16 %v81
    %v567 = vunpack.c.h.b16 %v81
    %v568 = vunpack.c.l.b16 %v82
    %v569 = vunpack.c.l.b16 %v83
    %v570 = vunpack.c.h.b16 %v83
    %v571 = vunpack.c.l.b16 %v84
    %v572 = vunpack.c.l.b16 %v85
    %v573 = vunpack.c.h.b16 %v85
    %v574 = vunpack.c.l.b16 %v86
    %v575 = vunpack.c.l.b16 %v87
    %v576 = vunpack.c.h.b16 %v87
    %v577 = vunpack.c.l.b16 %v88
    %v578 = vunpack.c.l.b16 %v89
    %v579 = vunpack.c.h.b16 %v89
    %v580 = vunpack.c.l.b16 %v90
    %v581 = vunpack.c.l.b16 %v91
    %v582 = vunpack.c.h.b16 %v91
    %v583 = vunpack.c.l.b16 %v92
    %v584 = vunpack.c.l.b16 %v93
    %v585 = vunpack.c.h.b16 %v93
    %v586 = vunpack.c.l.b16 %v94
    %v587 = vpack.c.b16 %v542, %v539
    %v588 = vpack.c.b16 %v543, %v540
    %v589 = vpack.c.b16 %v544, %v541
    %v590 = vpack.c.b16 %v548, %v545
    %v591 = vpack.c.b16 %v549, %v546
    %v592 = vpack.c.b16 %v550, %v547
    %v593 = vpack.c.b16 %v554, %v551
    %v594 = vpack.c.b16 %v555, %v552
    %v595 = vpack.c.b16 %v556, %v553
    %v596 = vpack.c.b16 %v560, %v557
    %v597 = vpack.c.b16 %v561, %v558
    %v598 = vpack.c.b16 %v562, %v559
    %v599 = vpack.c.b16 %v566, %v563
    %v600 = vpack.c.b16 %v567, %v564
    %v601 = vpack.c.b16 %v568, %v565
    %v602 = vpack.c.b16 %v572, %v569
    %v603 = vpack.c.b16 %v573, %v570
    %v604 = vpack.c.b16 %v574, %v571
    %v605 = vpack.c.b16 %v578, %v575
    %v606 = vpack.c.b16 %v579, %v576
    %v607 = vpack.c.b16 %v580, %v577
    %v608 = vpack.c.b16 %v584, %v581
    %v609 = vpack.c.b16 %v585, %v582
    %v610 = vpack.c.b16 %v586, %v583
    %635 = vmatpush.bf16.msra.mxu0 %v608
    %636 = vmatpush.bf16.msra.mxu0 %v605
    %637 = vmatpush.bf16.msra.mxu0 %v602
    %638 = vmatpush.bf16.msra.mxu0 %v599
    %639 = vmatpush.bf16.msra.mxu0 %v596
    %640 = vmatpush.bf16.msra.mxu0 %v593
    %641 = vmatpush.bf16.msra.mxu0 %v590
    %642 = vmatpush.bf16.msra.mxu0 %v587
    %643 = vmatmul.bf16.gmra.mxu0 %v506
    %v644 = vpop.f32.mrf.mxu0
    %v645 = vadd.f32 0.0, %v644
    %v646 = vpop.f32.mrf.mxu0
    %647 = vdwg.mxu0
    %648 = vmatpush.bf16.msra.mxu0 %v609
    %649 = vmatpush.bf16.msra.mxu0 %v606
    %650 = vmatpush.bf16.msra.mxu0 %v603
    %651 = vmatpush.bf16.msra.mxu0 %v600
    %652 = vmatpush.bf16.msra.mxu0 %v597
    %653 = vmatpush.bf16.msra.mxu0 %v594
    %654 = vmatpush.bf16.msra.mxu0 %v591
    %655 = vmatpush.bf16.msra.mxu0 %v588
    %656 = vmatmul.bf16.gmra.mxu0 %v506
    %v657 = vpop.f32.mrf.mxu0
    %v658 = vadd.f32 0.0, %v657
    %v659 = vpop.f32.mrf.mxu0
    %660 = vdwg.mxu0
    %661 = vmatpush.bf16.msra.mxu0 %v610
    %662 = vmatpush.bf16.msra.mxu0 %v607
    %663 = vmatpush.bf16.msra.mxu0 %v604
    %664 = vmatpush.bf16.msra.mxu0 %v601
    %665 = vmatpush.bf16.msra.mxu0 %v598
    %666 = vmatpush.bf16.msra.mxu0 %v595
    %667 = vmatpush.bf16.msra.mxu0 %v592
    %668 = vmatpush.bf16.msra.mxu0 %v589
    %669 = vmatmul.bf16.gmra.mxu0 %v506
    %v670 = vpop.f32.mrf.mxu0
    %v671 = vadd.f32 0.0, %v670
    %v672 = vpop.f32.mrf.mxu0
    %673 = vdwg.mxu0
    %v674 = vadd.f32 %v403, %v645
    %v675 = vxor.u32 %v674, 2147483648
    %v676 = vmul.f32 %v675, 1.442695
    %v677 = vpow.pop %v676
    %v678 = vadd.f32 %v677, 1.0
    %v679 = vrcp.pop %v678
    %v680 = vmul.f32 %v678, %v679
    %v681 = vsub.f32 1.0, %v680
    %v682 = vmul.f32 %v679, %v681
    %v683 = vadd.f32 %v679, %v682
    %vm684 = vweird.f32 %v678
    %vm685 = vweird.f32 %v679
    %vm686 = vmor %vm684, %vm685
    %v687 = vsel %vm686, %v679, %v683
    %v688 = vand.u32 2147483647, %v678
    %vm689 = vcmp.eq.f32.partialorder %v688, 8.507059e+37
    %v690 = vand.u32 %v678, 2147483648
    %v691 = vor.u32 1.1754944e-38, %v690
    %v692 = vsel %vm689, %v691, %v687
    %v693 = vmul.f32 1.0, %v692
    %v694 = vadd.f32 %v427, %v658
    %v695 = vxor.u32 %v694, 2147483648
    %v696 = vmul.f32 %v695, 1.442695
    %v697 = vpow.pop %v696
    %v698 = vadd.f32 %v697, 1.0
    %v699 = vrcp.pop %v698
    %v700 = vmul.f32 %v698, %v699
    %v701 = vsub.f32 1.0, %v700
    %v702 = vmul.f32 %v699, %v701
    %v703 = vadd.f32 %v699, %v702
    %vm704 = vweird.f32 %v698
    %vm705 = vweird.f32 %v699
    %vm706 = vmor %vm704, %vm705
    %v707 = vsel %vm706, %v699, %v703
    %v708 = vand.u32 2147483647, %v698
    %vm709 = vcmp.eq.f32.partialorder %v708, 8.507059e+37
    %v710 = vand.u32 %v698, 2147483648
    %v711 = vor.u32 1.1754944e-38, %v710
    %v712 = vsel %vm709, %v711, %v707
    %v713 = vmul.f32 1.0, %v712
    %v714 = vadd.f32 %v671, %v115
    %v715 = vmul.f32 %v693, %v714
    %v716 = vadd.f32 %v451, %v715
    %v717 = vtanh.pop %v716
    %v718 = vsub.f32 1.0, %v713
    %v719 = vmul.f32 %v718, %v717
    %v720 = vmul.f32 %v713, %v505
    %v721 = vadd.f32 %v719, %v720
    %v722 = vpack.c.bf16 %v721, %v721
    %723 = vmatpush.bf16.msra.mxu0 %v608
    %724 = vmatpush.bf16.msra.mxu0 %v605
    %725 = vmatpush.bf16.msra.mxu0 %v602
    %726 = vmatpush.bf16.msra.mxu0 %v599
    %727 = vmatpush.bf16.msra.mxu0 %v596
    %728 = vmatpush.bf16.msra.mxu0 %v593
    %729 = vmatpush.bf16.msra.mxu0 %v590
    %730 = vmatpush.bf16.msra.mxu0 %v587
    %731 = vmatmul.bf16.gmra.mxu0 %v722
    %v732 = vpop.f32.mrf.mxu0
    %v733 = vadd.f32 0.0, %v732
    %v734 = vpop.f32.mrf.mxu0
    %735 = vdwg.mxu0
    %736 = vmatpush.bf16.msra.mxu0 %v609
    %737 = vmatpush.bf16.msra.mxu0 %v606
    %738 = vmatpush.bf16.msra.mxu0 %v603
    %739 = vmatpush.bf16.msra.mxu0 %v600
    %740 = vmatpush.bf16.msra.mxu0 %v597
    %741 = vmatpush.bf16.msra.mxu0 %v594
    %742 = vmatpush.bf16.msra.mxu0 %v591
    %743 = vmatpush.bf16.msra.mxu0 %v588
    %744 = vmatmul.bf16.gmra.mxu0 %v722
    %v745 = vpop.f32.mrf.mxu0
    %v746 = vadd.f32 0.0, %v745
    %v747 = vpop.f32.mrf.mxu0
    %748 = vdwg.mxu0
    %749 = vmatpush.bf16.msra.mxu0 %v610
    %750 = vmatpush.bf16.msra.mxu0 %v607
    %751 = vmatpush.bf16.msra.mxu0 %v604
    %752 = vmatpush.bf16.msra.mxu0 %v601
    %753 = vmatpush.bf16.msra.mxu0 %v598
    %754 = vmatpush.bf16.msra.mxu0 %v595
    %755 = vmatpush.bf16.msra.mxu0 %v592
    %756 = vmatpush.bf16.msra.mxu0 %v589
    %757 = vmatmul.bf16.gmra.mxu0 %v722
    %v758 = vpop.f32.mrf.mxu0
    %v759 = vadd.f32 0.0, %v758
    %v760 = vpop.f32.mrf.mxu0
    %761 = vdwg.mxu0
    %v762 = vadd.f32 %v406, %v733
    %v763 = vxor.u32 %v762, 2147483648
    %v764 = vmul.f32 %v763, 1.442695
    %v765 = vpow.pop %v764
    %v766 = vadd.f32 %v765, 1.0
    %v767 = vrcp.pop %v766
    %v768 = vmul.f32 %v766, %v767
    %v769 = vsub.f32 1.0, %v768
    %v770 = vmul.f32 %v767, %v769
    %v771 = vadd.f32 %v767, %v770
    %vm772 = vweird.f32 %v766
    %vm773 = vweird.f32 %v767
    %vm774 = vmor %vm772, %vm773
    %v775 = vsel %vm774, %v767, %v771
    %v776 = vand.u32 2147483647, %v766
    %vm777 = vcmp.eq.f32.partialorder %v776, 8.507059e+37
    %v778 = vand.u32 %v766, 2147483648
    %v779 = vor.u32 1.1754944e-38, %v778
    %v780 = vsel %vm777, %v779, %v775
    %v781 = vmul.f32 1.0, %v780
    %v782 = vadd.f32 %v430, %v746
    %v783 = vxor.u32 %v782, 2147483648
    %v784 = vmul.f32 %v783, 1.442695
    %v785 = vpow.pop %v784
    %v786 = vadd.f32 %v785, 1.0
    %v787 = vrcp.pop %v786
    %v788 = vmul.f32 %v786, %v787
    %v789 = vsub.f32 1.0, %v788
    %v790 = vmul.f32 %v787, %v789
    %v791 = vadd.f32 %v787, %v790
    %vm792 = vweird.f32 %v786
    %vm793 = vweird.f32 %v787
    %vm794 = vmor %vm792, %vm793
    %v795 = vsel %vm794, %v787, %v791
    %v796 = vand.u32 2147483647, %v786
    %vm797 = vcmp.eq.f32.partialorder %v796, 8.507059e+37
    %v798 = vand.u32 %v786, 2147483648
    %v799 = vor.u32 1.1754944e-38, %v798
    %v800 = vsel %vm797, %v799, %v795
    %v801 = vmul.f32 1.0, %v800
    %v802 = vadd.f32 %v759, %v115
    %v803 = vmul.f32 %v781, %v802
    %v804 = vadd.f32 %v454, %v803
    %v805 = vtanh.pop %v804
    %v806 = vsub.f32 1.0, %v801
    %v807 = vmul.f32 %v806, %v805
    %v808 = vmul.f32 %v801, %v721
    %v809 = vadd.f32 %v807, %v808
    %v810 = vpack.c.bf16 %v809, %v809
    %811 = vmatpush.bf16.msra.mxu0 %v608
    %812 = vmatpush.bf16.msra.mxu0 %v605
    %813 = vmatpush.bf16.msra.mxu0 %v602
    %814 = vmatpush.bf16.msra.mxu0 %v599
    %815 = vmatpush.bf16.msra.mxu0 %v596
    %816 = vmatpush.bf16.msra.mxu0 %v593
    %817 = vmatpush.bf16.msra.mxu0 %v590
    %818 = vmatpush.bf16.msra.mxu0 %v587
    %819 = vmatmul.bf16.gmra.mxu0 %v810
    %v820 = vpop.f32.mrf.mxu0
    %v821 = vadd.f32 0.0, %v820
    %v822 = vpop.f32.mrf.mxu0
    %823 = vdwg.mxu0
    %824 = vmatpush.bf16.msra.mxu0 %v609
    %825 = vmatpush.bf16.msra.mxu0 %v606
    %826 = vmatpush.bf16.msra.mxu0 %v603
    %827 = vmatpush.bf16.msra.mxu0 %v600
    %828 = vmatpush.bf16.msra.mxu0 %v597
    %829 = vmatpush.bf16.msra.mxu0 %v594
    %830 = vmatpush.bf16.msra.mxu0 %v591
    %831 = vmatpush.bf16.msra.mxu0 %v588
    %832 = vmatmul.bf16.gmra.mxu0 %v810
    %v833 = vpop.f32.mrf.mxu0
    %v834 = vadd.f32 0.0, %v833
    %v835 = vpop.f32.mrf.mxu0
    %836 = vdwg.mxu0
    %837 = vmatpush.bf16.msra.mxu0 %v610
    %838 = vmatpush.bf16.msra.mxu0 %v607
    %839 = vmatpush.bf16.msra.mxu0 %v604
    %840 = vmatpush.bf16.msra.mxu0 %v601
    %841 = vmatpush.bf16.msra.mxu0 %v598
    %842 = vmatpush.bf16.msra.mxu0 %v595
    %843 = vmatpush.bf16.msra.mxu0 %v592
    %844 = vmatpush.bf16.msra.mxu0 %v589
    %845 = vmatmul.bf16.gmra.mxu0 %v810
    %v846 = vpop.f32.mrf.mxu0
    %v847 = vadd.f32 0.0, %v846
    %v848 = vpop.f32.mrf.mxu0
    %849 = vdwg.mxu0
    %v850 = vadd.f32 %v408, %v821
    %v851 = vxor.u32 %v850, 2147483648
    %v852 = vmul.f32 %v851, 1.442695
    %v853 = vpow.pop %v852
    %v854 = vadd.f32 %v853, 1.0
    %v855 = vrcp.pop %v854
    %v856 = vmul.f32 %v854, %v855
    %v857 = vsub.f32 1.0, %v856
    %v858 = vmul.f32 %v855, %v857
    %v859 = vadd.f32 %v855, %v858
    %vm860 = vweird.f32 %v854
    %vm861 = vweird.f32 %v855
    %vm862 = vmor %vm860, %vm861
    %v863 = vsel %vm862, %v855, %v859
    %v864 = vand.u32 2147483647, %v854
    %vm865 = vcmp.eq.f32.partialorder %v864, 8.507059e+37
    %v866 = vand.u32 %v854, 2147483648
    %v867 = vor.u32 1.1754944e-38, %v866
    %v868 = vsel %vm865, %v867, %v863
    %v869 = vmul.f32 1.0, %v868
    %v870 = vadd.f32 %v432, %v834
    %v871 = vxor.u32 %v870, 2147483648
    %v872 = vmul.f32 %v871, 1.442695
    %v873 = vpow.pop %v872
    %v874 = vadd.f32 %v873, 1.0
    %v875 = vrcp.pop %v874
    %v876 = vmul.f32 %v874, %v875
    %v877 = vsub.f32 1.0, %v876
    %v878 = vmul.f32 %v875, %v877
    %v879 = vadd.f32 %v875, %v878
    %vm880 = vweird.f32 %v874
    %vm881 = vweird.f32 %v875
    %vm882 = vmor %vm880, %vm881
    %v883 = vsel %vm882, %v875, %v879
    %v884 = vand.u32 2147483647, %v874
    %vm885 = vcmp.eq.f32.partialorder %v884, 8.507059e+37
    %v886 = vand.u32 %v874, 2147483648
    %v887 = vor.u32 1.1754944e-38, %v886
    %v888 = vsel %vm885, %v887, %v883
    %v889 = vmul.f32 1.0, %v888
    %v890 = vadd.f32 %v847, %v115
    %v891 = vmul.f32 %v869, %v890
    %v892 = vadd.f32 %v456, %v891
    %v893 = vtanh.pop %v892
    %v894 = vsub.f32 1.0, %v889
    %v895 = vmul.f32 %v894, %v893
    %v896 = vmul.f32 %v889, %v809
    %v897 = vadd.f32 %v895, %v896
    %v898 = vpack.c.bf16 %v897, %v897
    %899 = vmatpush.bf16.msra.mxu0 %v608
    %900 = vmatpush.bf16.msra.mxu0 %v605
    %901 = vmatpush.bf16.msra.mxu0 %v602
    %902 = vmatpush.bf16.msra.mxu0 %v599
    %903 = vmatpush.bf16.msra.mxu0 %v596
    %904 = vmatpush.bf16.msra.mxu0 %v593
    %905 = vmatpush.bf16.msra.mxu0 %v590
    %906 = vmatpush.bf16.msra.mxu0 %v587
    %907 = vmatmul.bf16.gmra.mxu0 %v898
    %v908 = vpop.f32.mrf.mxu0
    %v909 = vadd.f32 0.0, %v908
    %v910 = vpop.f32.mrf.mxu0
    %911 = vdwg.mxu0
    %912 = vmatpush.bf16.msra.mxu0 %v609
    %913 = vmatpush.bf16.msra.mxu0 %v606
    %914 = vmatpush.bf16.msra.mxu0 %v603
    %915 = vmatpush.bf16.msra.mxu0 %v600
    %916 = vmatpush.bf16.msra.mxu0 %v597
    %917 = vmatpush.bf16.msra.mxu0 %v594
    %918 = vmatpush.bf16.msra.mxu0 %v591
    %919 = vmatpush.bf16.msra.mxu0 %v588
    %920 = vmatmul.bf16.gmra.mxu0 %v898
    %v921 = vpop.f32.mrf.mxu0
    %v922 = vadd.f32 0.0, %v921
    %v923 = vpop.f32.mrf.mxu0
    %924 = vdwg.mxu0
    %925 = vmatpush.bf16.msra.mxu0 %v610
    %926 = vmatpush.bf16.msra.mxu0 %v607
    %927 = vmatpush.bf16.msra.mxu0 %v604
    %928 = vmatpush.bf16.msra.mxu0 %v601
    %929 = vmatpush.bf16.msra.mxu0 %v598
    %930 = vmatpush.bf16.msra.mxu0 %v595
    %931 = vmatpush.bf16.msra.mxu0 %v592
    %932 = vmatpush.bf16.msra.mxu0 %v589
    %933 = vmatmul.bf16.gmra.mxu0 %v898
    %v934 = vpop.f32.mrf.mxu0
    %v935 = vadd.f32 0.0, %v934
    %v936 = vpop.f32.mrf.mxu0
    %937 = vdwg.mxu0
    %v938 = vadd.f32 %v411, %v909
    %v939 = vxor.u32 %v938, 2147483648
    %v940 = vmul.f32 %v939, 1.442695
    %v941 = vpow.pop %v940
    %v942 = vadd.f32 %v941, 1.0
    %v943 = vrcp.pop %v942
    %v944 = vmul.f32 %v942, %v943
    %v945 = vsub.f32 1.0, %v944
    %v946 = vmul.f32 %v943, %v945
    %v947 = vadd.f32 %v943, %v946
    %vm948 = vweird.f32 %v942
    %vm949 = vweird.f32 %v943
    %vm950 = vmor %vm948, %vm949
    %v951 = vsel %vm950, %v943, %v947
    %v952 = vand.u32 2147483647, %v942
    %vm953 = vcmp.eq.f32.partialorder %v952, 8.507059e+37
    %v954 = vand.u32 %v942, 2147483648
    %v955 = vor.u32 1.1754944e-38, %v954
    %v956 = vsel %vm953, %v955, %v951
    %v957 = vmul.f32 1.0, %v956
    %v958 = vadd.f32 %v435, %v922
    %v959 = vxor.u32 %v958, 2147483648
    %v960 = vmul.f32 %v959, 1.442695
    %v961 = vpow.pop %v960
    %v962 = vadd.f32 %v961, 1.0
    %v963 = vrcp.pop %v962
    %v964 = vmul.f32 %v962, %v963
    %v965 = vsub.f32 1.0, %v964
    %v966 = vmul.f32 %v963, %v965
    %v967 = vadd.f32 %v963, %v966
    %vm968 = vweird.f32 %v962
    %vm969 = vweird.f32 %v963
    %vm970 = vmor %vm968, %vm969
    %v971 = vsel %vm970, %v963, %v967
    %v972 = vand.u32 2147483647, %v962
    %vm973 = vcmp.eq.f32.partialorder %v972, 8.507059e+37
    %v974 = vand.u32 %v962, 2147483648
    %v975 = vor.u32 1.1754944e-38, %v974
    %v976 = vsel %vm973, %v975, %v971
    %v977 = vmul.f32 1.0, %v976
    %v978 = vadd.f32 %v935, %v115
    %v979 = vmul.f32 %v957, %v978
    %v980 = vadd.f32 %v459, %v979
    %v981 = vtanh.pop %v980
    %v982 = vsub.f32 1.0, %v977
    %v983 = vmul.f32 %v982, %v981
    %v984 = vmul.f32 %v977, %v897
    %v985 = vadd.f32 %v983, %v984
    %v986 = vpack.c.bf16 %v985, %v985
    %987 = vmatpush.bf16.msra.mxu0 %v608
    %988 = vmatpush.bf16.msra.mxu0 %v605
    %989 = vmatpush.bf16.msra.mxu0 %v602
    %990 = vmatpush.bf16.msra.mxu0 %v599
    %991 = vmatpush.bf16.msra.mxu0 %v596
    %992 = vmatpush.bf16.msra.mxu0 %v593
    %993 = vmatpush.bf16.msra.mxu0 %v590
    %994 = vmatpush.bf16.msra.mxu0 %v587
    %995 = vmatmul.bf16.gmra.mxu0 %v986
    %v996 = vpop.f32.mrf.mxu0
    %v997 = vadd.f32 0.0, %v996
    %v998 = vpop.f32.mrf.mxu0
    %999 = vdwg.mxu0
    %1000 = vmatpush.bf16.msra.mxu0 %v609
    %1001 = vmatpush.bf16.msra.mxu0 %v606
    %1002 = vmatpush.bf16.msra.mxu0 %v603
    %1003 = vmatpush.bf16.msra.mxu0 %v600
    %1004 = vmatpush.bf16.msra.mxu0 %v597
    %1005 = vmatpush.bf16.msra.mxu0 %v594
    %1006 = vmatpush.bf16.msra.mxu0 %v591
    %1007 = vmatpush.bf16.msra.mxu0 %v588
    %1008 = vmatmul.bf16.gmra.mxu0 %v986
    %v1009 = vpop.f32.mrf.mxu0
    %v1010 = vadd.f32 0.0, %v1009
    %v1011 = vpop.f32.mrf.mxu0
    %1012 = vdwg.mxu0
    %1013 = vmatpush.bf16.msra.mxu0 %v610
    %1014 = vmatpush.bf16.msra.mxu0 %v607
    %1015 = vmatpush.bf16.msra.mxu0 %v604
    %1016 = vmatpush.bf16.msra.mxu0 %v601
    %1017 = vmatpush.bf16.msra.mxu0 %v598
    %1018 = vmatpush.bf16.msra.mxu0 %v595
    %1019 = vmatpush.bf16.msra.mxu0 %v592
    %1020 = vmatpush.bf16.msra.mxu0 %v589
    %1021 = vmatmul.bf16.gmra.mxu0 %v986
    %v1022 = vpop.f32.mrf.mxu0
    %v1023 = vadd.f32 0.0, %v1022
    %v1024 = vpop.f32.mrf.mxu0
    %1025 = vdwg.mxu0
    %v1026 = vadd.f32 %v413, %v997
    %v1027 = vxor.u32 %v1026, 2147483648
    %v1028 = vmul.f32 %v1027, 1.442695
    %v1029 = vpow.pop %v1028
    %v1030 = vadd.f32 %v1029, 1.0
    %v1031 = vrcp.pop %v1030
    %v1032 = vmul.f32 %v1030, %v1031
    %v1033 = vsub.f32 1.0, %v1032
    %v1034 = vmul.f32 %v1031, %v1033
    %v1035 = vadd.f32 %v1031, %v1034
    %vm1036 = vweird.f32 %v1030
    %vm1037 = vweird.f32 %v1031
    %vm1038 = vmor %vm1036, %vm1037
    %v1039 = vsel %vm1038, %v1031, %v1035
    %v1040 = vand.u32 2147483647, %v1030
    %vm1041 = vcmp.eq.f32.partialorder %v1040, 8.507059e+37
    %v1042 = vand.u32 %v1030, 2147483648
    %v1043 = vor.u32 1.1754944e-38, %v1042
    %v1044 = vsel %vm1041, %v1043, %v1039
    %v1045 = vmul.f32 1.0, %v1044
    %v1046 = vadd.f32 %v437, %v1010
    %v1047 = vxor.u32 %v1046, 2147483648
    %v1048 = vmul.f32 %v1047, 1.442695
    %v1049 = vpow.pop %v1048
    %v1050 = vadd.f32 %v1049, 1.0
    %v1051 = vrcp.pop %v1050
    %v1052 = vmul.f32 %v1050, %v1051
    %v1053 = vsub.f32 1.0, %v1052
    %v1054 = vmul.f32 %v1051, %v1053
    %v1055 = vadd.f32 %v1051, %v1054
    %vm1056 = vweird.f32 %v1050
    %vm1057 = vweird.f32 %v1051
    %vm1058 = vmor %vm1056, %vm1057
    %v1059 = vsel %vm1058, %v1051, %v1055
    %v1060 = vand.u32 2147483647, %v1050
    %vm1061 = vcmp.eq.f32.partialorder %v1060, 8.507059e+37
    %v1062 = vand.u32 %v1050, 2147483648
    %v1063 = vor.u32 1.1754944e-38, %v1062
    %v1064 = vsel %vm1061, %v1063, %v1059
    %v1065 = vmul.f32 1.0, %v1064
    %v1066 = vadd.f32 %v1023, %v115
    %v1067 = vmul.f32 %v1045, %v1066
    %v1068 = vadd.f32 %v461, %v1067
    %v1069 = vtanh.pop %v1068
    %v1070 = vsub.f32 1.0, %v1065
    %v1071 = vmul.f32 %v1070, %v1069
    %v1072 = vmul.f32 %v1065, %v985
    %v1073 = vadd.f32 %v1071, %v1072
    %v1074 = vpack.c.bf16 %v1073, %v1073
    %1075 = vmatpush.bf16.msra.mxu0 %v608
    %1076 = vmatpush.bf16.msra.mxu0 %v605
    %1077 = vmatpush.bf16.msra.mxu0 %v602
    %1078 = vmatpush.bf16.msra.mxu0 %v599
    %1079 = vmatpush.bf16.msra.mxu0 %v596
    %1080 = vmatpush.bf16.msra.mxu0 %v593
    %1081 = vmatpush.bf16.msra.mxu0 %v590
    %1082 = vmatpush.bf16.msra.mxu0 %v587
    %1083 = vmatmul.bf16.gmra.mxu0 %v1074
    %v1084 = vpop.f32.mrf.mxu0
    %v1085 = vadd.f32 0.0, %v1084
    %v1086 = vpop.f32.mrf.mxu0
    %1087 = vdwg.mxu0
    %1088 = vmatpush.bf16.msra.mxu0 %v609
    %1089 = vmatpush.bf16.msra.mxu0 %v606
    %1090 = vmatpush.bf16.msra.mxu0 %v603
    %1091 = vmatpush.bf16.msra.mxu0 %v600
    %1092 = vmatpush.bf16.msra.mxu0 %v597
    %1093 = vmatpush.bf16.msra.mxu0 %v594
    %1094 = vmatpush.bf16.msra.mxu0 %v591
    %1095 = vmatpush.bf16.msra.mxu0 %v588
    %1096 = vmatmul.bf16.gmra.mxu0 %v1074
    %v1097 = vpop.f32.mrf.mxu0
    %v1098 = vadd.f32 0.0, %v1097
    %v1099 = vpop.f32.mrf.mxu0
    %1100 = vdwg.mxu0
    %1101 = vmatpush.bf16.msra.mxu0 %v610
    %1102 = vmatpush.bf16.msra.mxu0 %v607
    %1103 = vmatpush.bf16.msra.mxu0 %v604
    %1104 = vmatpush.bf16.msra.mxu0 %v601
    %1105 = vmatpush.bf16.msra.mxu0 %v598
    %1106 = vmatpush.bf16.msra.mxu0 %v595
    %1107 = vmatpush.bf16.msra.mxu0 %v592
    %1108 = vmatpush.bf16.msra.mxu0 %v589
    %1109 = vmatmul.bf16.gmra.mxu0 %v1074
    %v1110 = vpop.f32.mrf.mxu0
    %v1111 = vadd.f32 0.0, %v1110
    %v1112 = vpop.f32.mrf.mxu0
    %1113 = vdwg.mxu0
    %v1114 = vadd.f32 %v118, %v1085
    %v1115 = vadd.f32 %v121, %v1085
    %v1116 = vxor.u32 %v1114, 2147483648
    %v1117 = vxor.u32 %v1115, 2147483648
    %v1118 = vmul.f32 %v1116, 1.442695
    %v1119 = vpow.pop %v1118
    %v1120 = vmul.f32 %v1117, 1.442695
    %v1121 = vpow.pop %v1120
    %v1122 = vadd.f32 %v1119, 1.0
    %v1123 = vadd.f32 %v1121, 1.0
    %v1124 = vrcp.pop %v1122
    %v1125 = vmul.f32 %v1122, %v1124
    %v1126 = vsub.f32 1.0, %v1125
    %v1127 = vmul.f32 %v1124, %v1126
    %v1128 = vadd.f32 %v1124, %v1127
    %vm1129 = vweird.f32 %v1122
    %vm1130 = vweird.f32 %v1124
    %vm1131 = vmor %vm1129, %vm1130
    %v1132 = vsel %vm1131, %v1124, %v1128
    %v1133 = vand.u32 2147483647, %v1122
    %vm1134 = vcmp.eq.f32.partialorder %v1133, 8.507059e+37
    %v1135 = vand.u32 %v1122, 2147483648
    %v1136 = vor.u32 1.1754944e-38, %v1135
    %v1137 = vsel %vm1134, %v1136, %v1132
    %v1138 = vmul.f32 1.0, %v1137
    %v1139 = vrcp.pop %v1123
    %v1140 = vmul.f32 %v1123, %v1139
    %v1141 = vsub.f32 1.0, %v1140
    %v1142 = vmul.f32 %v1139, %v1141
    %v1143 = vadd.f32 %v1139, %v1142
    %vm1144 = vweird.f32 %v1123
    %vm1145 = vweird.f32 %v1139
    %vm1146 = vmor %vm1144, %vm1145
    %v1147 = vsel %vm1146, %v1139, %v1143
    %v1148 = vand.u32 2147483647, %v1123
    %vm1149 = vcmp.eq.f32.partialorder %v1148, 8.507059e+37
    %v1150 = vand.u32 %v1123, 2147483648
    %v1151 = vor.u32 1.1754944e-38, %v1150
    %v1152 = vsel %vm1149, %v1151, %v1147
    %v1153 = vmul.f32 1.0, %v1152
    %v1154 = vadd.f32 %v119, %v1098
    %v1155 = vadd.f32 %v122, %v1098
    %v1156 = vxor.u32 %v1154, 2147483648
    %v1157 = vxor.u32 %v1155, 2147483648
    %v1158 = vmul.f32 %v1156, 1.442695
    %v1159 = vpow.pop %v1158
    %v1160 = vmul.f32 %v1157, 1.442695
    %v1161 = vpow.pop %v1160
    %v1162 = vadd.f32 %v1159, 1.0
    %v1163 = vadd.f32 %v1161, 1.0
    %v1164 = vrcp.pop %v1162
    %v1165 = vmul.f32 %v1162, %v1164
    %v1166 = vsub.f32 1.0, %v1165
    %v1167 = vmul.f32 %v1164, %v1166
    %v1168 = vadd.f32 %v1164, %v1167
    %vm1169 = vweird.f32 %v1162
    %vm1170 = vweird.f32 %v1164
    %vm1171 = vmor %vm1169, %vm1170
    %v1172 = vsel %vm1171, %v1164, %v1168
    %v1173 = vand.u32 2147483647, %v1162
    %vm1174 = vcmp.eq.f32.partialorder %v1173, 8.507059e+37
    %v1175 = vand.u32 %v1162, 2147483648
    %v1176 = vor.u32 1.1754944e-38, %v1175
    %v1177 = vsel %vm1174, %v1176, %v1172
    %v1178 = vmul.f32 1.0, %v1177
    %v1179 = vrcp.pop %v1163
    %v1180 = vmul.f32 %v1163, %v1179
    %v1181 = vsub.f32 1.0, %v1180
    %v1182 = vmul.f32 %v1179, %v1181
    %v1183 = vadd.f32 %v1179, %v1182
    %vm1184 = vweird.f32 %v1163
    %vm1185 = vweird.f32 %v1179
    %vm1186 = vmor %vm1184, %vm1185
    %v1187 = vsel %vm1186, %v1179, %v1183
    %v1188 = vand.u32 2147483647, %v1163
    %vm1189 = vcmp.eq.f32.partialorder %v1188, 8.507059e+37
    %v1190 = vand.u32 %v1163, 2147483648
    %v1191 = vor.u32 1.1754944e-38, %v1190
    %v1192 = vsel %vm1189, %v1191, %v1187
    %v1193 = vmul.f32 1.0, %v1192
    %v1194 = vadd.f32 %v1111, %v115
    %v1195 = vmul.f32 %v1138, %v1194
    %v1196 = vmul.f32 %v1153, %v1194
    %v1197 = vadd.f32 %v120, %v1195
    %v1198 = vadd.f32 %v123, %v1196
    %v1199 = vtanh.pop %v1197
    %v1200 = vtanh.pop %v1198
    %v1201 = vsub.f32 1.0, %v1178
    %v1202 = vsub.f32 1.0, %v1193
    %v1203 = vmul.f32 %v1201, %v1199
    %v1204 = vmul.f32 %v1202, %v1200
    %v1205 = vmul.f32 %v1178, %v1073
    %v1206 = vmul.f32 %v1193, %v1073
    %v1207 = vadd.f32 %v1203, %v1205
    %v1208 = vadd.f32 %v1204, %v1206
    %v1209 = vpack.c.bf16 %v1208, %v1207
    %v1226 = vunpack.c.l.b16 %v97
    %v1227 = vunpack.c.l.b16 %v98
    %v1228 = vunpack.c.l.b16 %v99
    %v1229 = vunpack.c.l.b16 %v100
    %v1230 = vunpack.c.l.b16 %v101
    %v1231 = vunpack.c.l.b16 %v102
    %v1232 = vunpack.c.l.b16 %v103
    %v1233 = vunpack.c.l.b16 %v104
    %v1234 = vunpack.c.l.b16 %v105
    %v1235 = vunpack.c.l.b16 %v106
    %v1236 = vunpack.c.l.b16 %v107
    %v1237 = vunpack.c.l.b16 %v108
    %v1238 = vunpack.c.l.b16 %v109
    %v1239 = vunpack.c.l.b16 %v110
    %v1240 = vunpack.c.l.b16 %v111
    %v1241 = vunpack.c.l.b16 %v112
    %v1242 = vpack.c.b16 %v1227, %v1226
    %v1243 = vpack.c.b16 %v1229, %v1228
    %v1244 = vpack.c.b16 %v1231, %v1230
    %v1245 = vpack.c.b16 %v1233, %v1232
    %v1246 = vpack.c.b16 %v1235, %v1234
    %v1247 = vpack.c.b16 %v1237, %v1236
    %v1248 = vpack.c.b16 %v1239, %v1238
    %v1249 = vpack.c.b16 %v1241, %v1240
    %1258 = vmatpush.bf16.msra.mxu0 %v1249
    %1259 = vmatpush.bf16.msra.mxu0 %v1248
    %1260 = vmatpush.bf16.msra.mxu0 %v1247
    %1261 = vmatpush.bf16.msra.mxu0 %v1246
    %1262 = vmatpush.bf16.msra.mxu0 %v1245
    %1263 = vmatpush.bf16.msra.mxu0 %v1244
    %1264 = vmatpush.bf16.msra.mxu0 %v1243
    %1265 = vmatpush.bf16.msra.mxu0 %v1242
    %1266 = vmatmul.bf16.gmra.mxu0 %v1209
    %v1267 = vpop.f32.mrf.mxu0
    %v1268 = vadd.f32 %v116, %v1267
    %v1269 = vpop.f32.mrf.mxu0
    %v1270 = vadd.f32 %v116, %v1269
    %1271 = vdwg.mxu0
    %v1272 = vmul.f32 %v139, %v117
    %1274 = vrot.lane.b32.xlu0 %v117, 127
    %v1275 = vpop.permute.xlu0 %1274
    %v1277 = vadd.f32 %v1272, %v1275
    %1279 = vset.pattern.permute.xlu0 0
    %1280 = vperm.xlu0 %1279, %v178
    %v1281 = vpop.permute.xlu0 %1280
    %v1283 = vmul.f32 %v1268, %v1281
    %v1284 = vmul.f32 %v1270, %v1281
    %1286 = vset.pattern.permute.xlu0 0
    %1287 = vperm.xlu0 %1286, %v1277
    %v1288 = vpop.permute.xlu0 %1287
    %v1290 = vadd.f32 %v1283, %v1288
    %v1291 = vadd.f32 %v1284, %v1288
    %1292 = vst.msk [vmem:[%s3] sm:$0xff] %vm135, %v1290
    %1293 = vst.msk [vmem:[%s3 + $0x8] sm:$0xff] %vm135, %v1291
    // Predicated region
    $region18: #{ensemble_forward.1} parent=1 // pred_check
      _
    $region19: #{ensemble_forward.1} parent=1 // pred_check_branch
      %1295 = sbr.rel (0) target = $region21
    $region20: #{ensemble_forward.1} parent=1 // pred_region
      _
    $region21: #{ensemble_forward.1} parent=1 // pred_fallthru
      _
    // Predicated region
    $region22: #{ensemble_forward.1} parent=1 // pred_check
      _
    $region23: #{ensemble_forward.1} parent=1 // pred_check_branch
      %1297 = sbr.rel (0) target = $region25
    $region24: #{ensemble_forward.1} parent=1 // pred_region
      _
    $region25: #{ensemble_forward.1} parent=1 // pred_fallthru
      _
    %1298 = vsyncpa [#allocation3], 1

</llo_original>
